<compile_context>
chip_gen: v6e
topology: v6e:2x2x1
jax: 0.10.0
libtpu: 0.0.40
codegen_flags: <defaults>
</compile_context>

<pallas_src>
import functools

import jax
import jax.numpy as jnp
import numpy as np
from jax.experimental import pallas as pl
from jax.experimental.pallas import tpu as pltpu

NEG_SLOPE = 0.01   # nn.LeakyReLU default negative_slope
BN_EPS = 1e-5      # nn.BatchNorm2d default eps
_HIGHEST = jax.lax.Precision.HIGHEST   # reference only


def _downsample_kernel(x_ref, m1_ref, s1_ref, b1_ref, m2_ref, s2_ref, b2_ref,
                       down_ref, pool_ref, h1_ref, *, cout):
    # x_ref:   (N, H, W*Cin)   f32  lane-flat input rows
    # m1_ref:  (3, W*Cin,  W1*cout)  bf16 per-ky shifted band weight matrices
    # m2_ref:  (3, W1*cout, W2*cout) bf16
    # s*/b*:   (1, W*cout) f32       BN scale/shift (conv bias folded), tiled on W
    # down_ref:(N, H2, W2*cout) f32  lane-dense output slab
    # pool_ref:(N, Hp, Wp*cout) f32  lane-dense pooled output slab
    # h1_ref:  (N, H1, W1*cout) f32  VMEM scratch for the intermediate activation
    n, h, wc_in = x_ref.shape
    h1 = h - 2
    wc1 = m1_ref.shape[-1]
    h2 = h1 - 2
    wc2 = m2_ref.shape[-1]

    def conv_rows(src_ref, h_out, wc_src, m_ref):
        # 3 MXU matmuls (one per ky); kx taps + channel contraction are folded
        # into the band matrices.  Row windows come from ref slices (vld path),
        # not in-register sublane-offset value slices.
        acc = jnp.zeros((n * h_out, m_ref.shape[-1]), jnp.float32)
        for ky in range(3):
            rows = src_ref[:, pl.ds(ky, h_out), :].reshape(n * h_out, wc_src)
            rows = rows.astype(jnp.bfloat16)                 # native bf16 MXU path
            acc = acc + jnp.dot(rows, m_ref[ky],
                                preferred_element_type=jnp.float32)
        return acc

    def bn_lrelu(acc, s_ref, b_ref):
        z = acc * s_ref[...] + b_ref[...]        # BN (eval) + conv bias folded
        return jnp.where(z > 0, z, NEG_SLOPE * z)   # LeakyReLU

    # ---- conv1 + BN + LeakyReLU -> h1 scratch ----
    a1 = conv_rows(x_ref, h1, wc_in, m1_ref)
    h1_ref[...] = bn_lrelu(a1, s1_ref, b1_ref).reshape(n, h1, wc1)

    # ---- conv2 + BN + LeakyReLU -> down ----
    a2 = conv_rows(h1_ref, h2, wc1, m2_ref)
    down = bn_lrelu(a2, s2_ref, b2_ref).reshape(n, h2, wc2)
    down_ref[...] = down                         # single lane-dense store

    # ---- MaxPool2d(kernel_size=2, stride=2), fully vectorized ----
    hp = h2 // 2
    w2 = wc2 // cout
    wp = w2 // 2
    d = down[:, : 2 * hp, :].reshape(n, hp, 2, wc2)             # pair rows (H)
    hmax = jnp.maximum(d[:, :, 0, :], d[:, :, 1, :])            # (n, hp, W2*cout)
    w4 = hmax[..., : wp * 2 * cout].reshape(n, hp, wp, 2 * cout)  # pair W blocks
    pooled = jnp.maximum(w4[..., :cout], w4[..., cout:])        # (n, hp, wp, cout)
    pool_ref[...] = pooled.reshape(n, hp, wp * cout)            # lane-dense store


def downsample_forward_nhwc(x_nhwc, kp):
    """NHWC fast path: no layout transposes anywhere (only free reshapes)."""
    x_nhwc = x_nhwc.astype(jnp.float32)
    N, H, W, Cin = x_nhwc.shape
    H1, W1 = H - 2, W - 2
    H2, W2 = H1 - 2, W1 - 2
    Hp, Wp = H2 // 2, W2 // 2
    C1 = kp["m1"].shape[-1] // W1
    # The folded band matrices are width-specific; fail loudly on a mismatch.
    assert kp["m1"].shape[1] == W * Cin, "params were folded for a different W/Cin"

    x_flat = x_nhwc.reshape(N, H, W * Cin)   # contiguous repack -> rows x (W*Cin)

    kernel = functools.partial(_downsample_kernel, cout=C1)
    # Batch folded into one block (grid of a single step): the whole problem is
    # ~1 MFLOP, so splitting it across grid steps / TensorCores only duplicates
    # fixed overhead; folding also doubles the MXU M dimension.
    down_flat, pool_flat = pl.pallas_call(
        kernel,
        out_shape=(jax.ShapeDtypeStruct((N, H2, W2 * C1), jnp.float32),
                   jax.ShapeDtypeStruct((N, Hp, Wp * C1), jnp.float32)),
        grid=(1,),
        in_specs=[
            pl.BlockSpec((N, H, W * Cin), lambda i: (0, 0, 0)),        # x rows
            pl.BlockSpec((3, W * Cin, W1 * C1), lambda i: (0, 0, 0)),  # conv1 bands
            pl.BlockSpec((1, W1 * C1), lambda i: (0, 0)),              # bn1 scale
            pl.BlockSpec((1, W1 * C1), lambda i: (0, 0)),              # bn1 shift
            pl.BlockSpec((3, W1 * C1, W2 * C1), lambda i: (0, 0, 0)),  # conv2 bands
            pl.BlockSpec((1, W2 * C1), lambda i: (0, 0)),              # bn2 scale
            pl.BlockSpec((1, W2 * C1), lambda i: (0, 0)),              # bn2 shift
        ],
        out_specs=(
            pl.BlockSpec((N, H2, W2 * C1), lambda i: (0, 0, 0)),
            pl.BlockSpec((N, Hp, Wp * C1), lambda i: (0, 0, 0)),
        ),
        scratch_shapes=[pltpu.VMEM((N, H1, W1 * C1), jnp.float32)],   # h1 staging
        compiler_params=pltpu.CompilerParams(dimension_semantics=("arbitrary",)),
    )(x_flat, kp["m1"], kp["s1"], kp["b1"], kp["m2"], kp["s2"], kp["b2"])

    down = down_flat.reshape(N, H2, W2, C1)   # free reshapes outside the kernel
    pool = pool_flat.reshape(N, Hp, Wp, C1)
    return down, pool


def downsample_forward(x_nchw, kp):
    """PyTorch-layout (NCHW) adapter.  An NHWC pipeline should call
    downsample_forward_nhwc directly and skip these transposes entirely."""
    x_nhwc = jnp.transpose(x_nchw, (0, 2, 3, 1))
    down, pool = downsample_forward_nhwc(x_nhwc, kp)
    return (jnp.transpose(down, (0, 3, 1, 2)),
            jnp.transpose(pool, (0, 3, 1, 2)))


# ------------------------- parameter construction -------------------------

def make_raw_params(key, in_channels, out_channels):
    ks = jax.random.split(key, 12)
    f32 = jnp.float32
    return {
        "w1": 0.2 * jax.random.normal(ks[0], (out_channels, in_channels, 3, 3), f32),
        "bias1": 0.1 * jax.random.normal(ks[1], (out_channels,), f32),
        "gamma1": 1.0 + 0.1 * jax.random.normal(ks[2], (out_channels,), f32),
        "beta1": 0.1 * jax.random.normal(ks[3], (out_channels,), f32),
        "mean1": 0.05 * jax.random.normal(ks[4], (out_channels,), f32),
        "var1": 0.5 + jnp.abs(jax.random.normal(ks[5], (out_channels,), f32)),
        "w2": 0.2 * jax.random.normal(ks[6], (out_channels, out_channels, 3, 3), f32),
        "bias2": 0.1 * jax.random.normal(ks[7], (out_channels,), f32),
        "gamma2": 1.0 + 0.1 * jax.random.normal(ks[8], (out_channels,), f32),
        "beta2": 0.1 * jax.random.normal(ks[9], (out_channels,), f32),
        "mean2": 0.05 * jax.random.normal(ks[10], (out_channels,), f32),
        "var2": 0.5 + jnp.abs(jax.random.normal(ks[11], (out_channels,), f32)),
    }


def fold_params(p, width):
    """Host-side repack (done once): build per-ky shifted band matrices so the
    (kx, channel) contraction of a 3x3 VALID conv becomes one matmul per image
    row, and fold conv bias + BatchNorm (eval mode) into a tiled scale/shift.

    Band matrix for one ky:  M[xin*cin + ci, xo*cout + co] = w[co, ci, ky, xin-xo]
    whenever 0 <= xin-xo <= 2 (else 0), so that for a lane-flat row
    v[x*cin + ci] = img[y+ky, x, ci]:
        (v @ M)[xo*cout + co] = sum_{kx,ci} img[y+ky, xo+kx, ci] * w[co, ci, ky, kx]
    Band matrices are stored in bf16 (native MXU path, half the VMEM/DMA);
    BN scale/shift stay f32 and are applied to the f32 accumulator.
    Note: the matrices depend on the image width (fixed per UNet stage).
    """
    def band(w_oihw, w_in):
        w = np.asarray(w_oihw, np.float32)          # (cout, cin, 3, 3)
        cout, cin = w.shape[0], w.shape[1]
        w_out = w_in - 2
        mats = []
        for ky in range(3):
            m = np.zeros((w_in, cin, w_out, cout), np.float32)
            for kx in range(3):
                tap = w[:, :, ky, kx].T             # (cin, cout)
                for xo in range(w_out):
                    m[xo + kx, :, xo, :] = tap
            mats.append(m.reshape(w_in * cin, w_out * cout))
        return np.stack(mats, axis=0)               # (3, w_in*cin, w_out*cout)

    def bn_fold(bias, gamma, beta, mean, var, w_out):
        scale = np.asarray(gamma, np.float32) / np.sqrt(np.asarray(var, np.float32) + BN_EPS)
        shift = np.asarray(beta, np.float32) + (np.asarray(bias, np.float32)
                                                - np.asarray(mean, np.float32)) * scale
        return (np.tile(scale, w_out)[None, :].astype(np.float32),
                np.tile(shift, w_out)[None, :].astype(np.float32))

    W = int(width)
    W1, W2 = W - 2, W - 4
    m1 = band(p["w1"], W)
    s1, b1 = bn_fold(p["bias1"], p["gamma1"], p["beta1"], p["mean1"], p["var1"], W1)
    m2 = band(p["w2"], W1)
    s2, b2 = bn_fold(p["bias2"], p["gamma2"], p["beta2"], p["mean2"], p["var2"], W2)
    return {"m1": jnp.asarray(m1, jnp.bfloat16), "s1": jnp.asarray(s1), "b1": jnp.asarray(b1),
            "m2": jnp.asarray(m2, jnp.bfloat16), "s2": jnp.asarray(s2), "b2": jnp.asarray(b2)}


# ---------------------------- pure-JAX reference ---------------------------

def reference_forward(x_nchw, p):
    def block(h, w, bias, gamma, beta, mean, var):
        z = jax.lax.conv_general_dilated(h, w, (1, 1), "VALID",
                                         dimension_numbers=("NCHW", "OIHW", "NCHW"),
                                         precision=_HIGHEST)
        z = z + bias[None, :, None, None]
        z = (z - mean[None, :, None, None]) / jnp.sqrt(var[None, :, None, None] + BN_EPS)
        z = z * gamma[None, :, None, None] + beta[None, :, None, None]
        return jnp.where(z > 0, z, NEG_SLOPE * z)

    d = block(x_nchw, p["w1"], p["bias1"], p["gamma1"], p["beta1"], p["mean1"], p["var1"])
    d = block(d, p["w2"], p["bias2"], p["gamma2"], p["beta2"], p["mean2"], p["var2"])
    pooled = jax.lax.reduce_window(d, -jnp.inf, jax.lax.max,
                                   (1, 1, 2, 2), (1, 1, 2, 2), "VALID")
    return d, pooled


if __name__ == "__main__":
    key = jax.random.PRNGKey(0)
    k_x, k_p = jax.random.split(key)

    in_channels, out_channels = 4, 8
    N, H, W = 2, 16, 16
    x = jax.random.normal(k_x, (N, in_channels, H, W), jnp.float32)   # PyTorch NCHW

    raw_params = make_raw_params(k_p, in_channels, out_channels)
    kernel_params = fold_params(raw_params, width=W)

    down, pooled = downsample_forward(x, kernel_params)
    jax.block_until_ready((down, pooled))

    assert down.shape == (N, out_channels, H - 4, W - 4)
    assert pooled.shape == (N, out_channels, (H - 4) // 2, (W - 4) // 2)

    # Reference is f32 HIGHEST; kernel uses the native bf16 MXU path with f32
    # accumulation, so compare with a correspondingly wider tolerance.
    d_ref, p_ref = reference_forward(x, raw_params)
    assert jnp.allclose(down, d_ref, atol=3e-2, rtol=3e-2), \
        float(jnp.max(jnp.abs(down - d_ref)))
    assert jnp.allclose(pooled, p_ref, atol=3e-2, rtol=3e-2), \
        float(jnp.max(jnp.abs(pooled - p_ref)))

    print("KERNEL_OK")
</pallas_src>

<mosaic_0001>
module attributes {stable_mosaic.version = 11 : i64} {
  func.func @_downsample_kernel(%arg0: i32, %arg1: memref<2x16x64xf32, #tpu.memory_space<vmem>>, %arg2: memref<3x64x112xbf16, #tpu.memory_space<vmem>>, %arg3: memref<1x112xf32, #tpu.memory_space<vmem>>, %arg4: memref<1x112xf32, #tpu.memory_space<vmem>>, %arg5: memref<3x112x96xbf16, #tpu.memory_space<vmem>>, %arg6: memref<1x96xf32, #tpu.memory_space<vmem>>, %arg7: memref<1x96xf32, #tpu.memory_space<vmem>>, %arg8: memref<2x12x96xf32, #tpu.memory_space<vmem>>, %arg9: memref<2x6x48xf32, #tpu.memory_space<vmem>>, %arg10: memref<2x14x112xf32, #tpu.memory_space<vmem>>) attributes {dimension_semantics = [#tpu.dimension_semantics<arbitrary>], iteration_bounds = array<i64: 1>, scalar_prefetch = 0 : i64, scratch_operands = 1 : i64, tpu.core_type = #tpu.core_type<tc>, window_params = [{pipeline_mode = #tpu.pipeline_mode<synchronous>, transform_indices = @transform_0, window_bounds = array<i64: 2, 16, 64>}, {pipeline_mode = #tpu.pipeline_mode<synchronous>, transform_indices = @transform_1, window_bounds = array<i64: 3, 64, 112>}, {pipeline_mode = #tpu.pipeline_mode<synchronous>, transform_indices = @transform_2, window_bounds = array<i64: 1, 112>}, {pipeline_mode = #tpu.pipeline_mode<synchronous>, transform_indices = @transform_3, window_bounds = array<i64: 1, 112>}, {pipeline_mode = #tpu.pipeline_mode<synchronous>, transform_indices = @transform_4, window_bounds = array<i64: 3, 112, 96>}, {pipeline_mode = #tpu.pipeline_mode<synchronous>, transform_indices = @transform_5, window_bounds = array<i64: 1, 96>}, {pipeline_mode = #tpu.pipeline_mode<synchronous>, transform_indices = @transform_6, window_bounds = array<i64: 1, 96>}, {pipeline_mode = #tpu.pipeline_mode<synchronous>, transform_indices = @transform_7, window_bounds = array<i64: 2, 12, 96>}, {pipeline_mode = #tpu.pipeline_mode<synchronous>, transform_indices = @transform_8, window_bounds = array<i64: 2, 6, 48>}]} {
    %cst = arith.constant 0.000000e+00 : f32
    %0 = vector.broadcast %cst : f32 to vector<28x112xf32>
    %c0 = arith.constant 0 : index
    %c0_0 = arith.constant 0 : index
    %c0_1 = arith.constant 0 : index
    %1 = vector.load %arg1[%c0, %c0_0, %c0_1] : memref<2x16x64xf32, #tpu.memory_space<vmem>>, vector<2x14x64xf32>
    %2 = vector.shape_cast %1 : vector<2x14x64xf32> to vector<28x64xf32>
    %3 = arith.truncf %2 : vector<28x64xf32> to vector<28x64xbf16>
    %c0_2 = arith.constant 0 : index
    %c0_3 = arith.constant 0 : index
    %c0_4 = arith.constant 0 : index
    %4 = vector.load %arg2[%c0_2, %c0_3, %c0_4] : memref<3x64x112xbf16, #tpu.memory_space<vmem>>, vector<1x64x112xbf16>
    %5 = vector.shape_cast %4 : vector<1x64x112xbf16> to vector<64x112xbf16>
    %cst_5 = arith.constant dense<0.000000e+00> : vector<28x112xf32>
    %6 = tpu.matmul %3, %5, %cst_5 {dimension_numbers = #tpu.dot_dimension_numbers<[1], [0], [0], [1], [0, 0, 1, 1], [], []>} : vector<28x64xbf16>, vector<64x112xbf16>, vector<28x112xf32> -> vector<28x112xf32>
    %7 = arith.addf %0, %6 : vector<28x112xf32>
    %c0_6 = arith.constant 0 : index
    %c1 = arith.constant 1 : index
    %c0_7 = arith.constant 0 : index
    %8 = vector.load %arg1[%c0_6, %c1, %c0_7] : memref<2x16x64xf32, #tpu.memory_space<vmem>>, vector<2x14x64xf32>
    %9 = vector.shape_cast %8 : vector<2x14x64xf32> to vector<28x64xf32>
    %10 = arith.truncf %9 : vector<28x64xf32> to vector<28x64xbf16>
    %c1_8 = arith.constant 1 : index
    %c0_9 = arith.constant 0 : index
    %c0_10 = arith.constant 0 : index
    %11 = vector.load %arg2[%c1_8, %c0_9, %c0_10] : memref<3x64x112xbf16, #tpu.memory_space<vmem>>, vector<1x64x112xbf16>
    %12 = vector.shape_cast %11 : vector<1x64x112xbf16> to vector<64x112xbf16>
    %cst_11 = arith.constant dense<0.000000e+00> : vector<28x112xf32>
    %13 = tpu.matmul %10, %12, %cst_11 {dimension_numbers = #tpu.dot_dimension_numbers<[1], [0], [0], [1], [0, 0, 1, 1], [], []>} : vector<28x64xbf16>, vector<64x112xbf16>, vector<28x112xf32> -> vector<28x112xf32>
    %14 = arith.addf %7, %13 : vector<28x112xf32>
    %c0_12 = arith.constant 0 : index
    %c2 = arith.constant 2 : index
    %c0_13 = arith.constant 0 : index
    %15 = vector.load %arg1[%c0_12, %c2, %c0_13] : memref<2x16x64xf32, #tpu.memory_space<vmem>>, vector<2x14x64xf32>
    %16 = vector.shape_cast %15 : vector<2x14x64xf32> to vector<28x64xf32>
    %17 = arith.truncf %16 : vector<28x64xf32> to vector<28x64xbf16>
    %c2_14 = arith.constant 2 : index
    %c0_15 = arith.constant 0 : index
    %c0_16 = arith.constant 0 : index
    %18 = vector.load %arg2[%c2_14, %c0_15, %c0_16] : memref<3x64x112xbf16, #tpu.memory_space<vmem>>, vector<1x64x112xbf16>
    %19 = vector.shape_cast %18 : vector<1x64x112xbf16> to vector<64x112xbf16>
    %cst_17 = arith.constant dense<0.000000e+00> : vector<28x112xf32>
    %20 = tpu.matmul %17, %19, %cst_17 {dimension_numbers = #tpu.dot_dimension_numbers<[1], [0], [0], [1], [0, 0, 1, 1], [], []>} : vector<28x64xbf16>, vector<64x112xbf16>, vector<28x112xf32> -> vector<28x112xf32>
    %21 = arith.addf %14, %20 : vector<28x112xf32>
    %c0_18 = arith.constant 0 : index
    %c0_19 = arith.constant 0 : index
    %22 = vector.load %arg3[%c0_18, %c0_19] : memref<1x112xf32, #tpu.memory_space<vmem>>, vector<1x112xf32>
    %23 = vector.broadcast %22 : vector<1x112xf32> to vector<28x112xf32>
    %24 = arith.mulf %21, %23 : vector<28x112xf32>
    %c0_20 = arith.constant 0 : index
    %c0_21 = arith.constant 0 : index
    %25 = vector.load %arg4[%c0_20, %c0_21] : memref<1x112xf32, #tpu.memory_space<vmem>>, vector<1x112xf32>
    %26 = vector.broadcast %25 : vector<1x112xf32> to vector<28x112xf32>
    %27 = arith.addf %24, %26 : vector<28x112xf32>
    %cst_22 = arith.constant 0.000000e+00 : f32
    %28 = vector.broadcast %cst_22 : f32 to vector<28x112xf32>
    %29 = arith.cmpf ogt, %27, %28 : vector<28x112xf32>
    %cst_23 = arith.constant 0.00999999977 : f32
    %30 = vector.broadcast %cst_23 : f32 to vector<28x112xf32>
    %31 = arith.mulf %30, %27 : vector<28x112xf32>
    %32 = arith.select %29, %27, %31 : vector<28x112xi1>, vector<28x112xf32>
    %33 = vector.shape_cast %32 : vector<28x112xf32> to vector<2x14x112xf32>
    %c0_24 = arith.constant 0 : index
    %c0_25 = arith.constant 0 : index
    %c0_26 = arith.constant 0 : index
    %34 = vector.load %arg10[%c0_24, %c0_25, %c0_26] : memref<2x14x112xf32, #tpu.memory_space<vmem>>, vector<2x14x112xf32>
    tpu.vector_store %arg10[%c0_24, %c0_25, %c0_26], %33 {strides = array<i32>} : memref<2x14x112xf32, #tpu.memory_space<vmem>>, vector<2x14x112xf32>,
    %cst_27 = arith.constant 0.000000e+00 : f32
    %35 = vector.broadcast %cst_27 : f32 to vector<24x96xf32>
    %c0_28 = arith.constant 0 : index
    %c0_29 = arith.constant 0 : index
    %c0_30 = arith.constant 0 : index
    %36 = vector.load %arg10[%c0_28, %c0_29, %c0_30] : memref<2x14x112xf32, #tpu.memory_space<vmem>>, vector<2x12x112xf32>
    %37 = vector.shape_cast %36 : vector<2x12x112xf32> to vector<24x112xf32>
    %38 = arith.truncf %37 : vector<24x112xf32> to vector<24x112xbf16>
    %c0_31 = arith.constant 0 : index
    %c0_32 = arith.constant 0 : index
    %c0_33 = arith.constant 0 : index
    %39 = vector.load %arg5[%c0_31, %c0_32, %c0_33] : memref<3x112x96xbf16, #tpu.memory_space<vmem>>, vector<1x112x96xbf16>
    %40 = vector.shape_cast %39 : vector<1x112x96xbf16> to vector<112x96xbf16>
    %cst_34 = arith.constant dense<0.000000e+00> : vector<24x96xf32>
    %41 = tpu.matmul %38, %40, %cst_34 {dimension_numbers = #tpu.dot_dimension_numbers<[1], [0], [0], [1], [0, 0, 1, 1], [], []>} : vector<24x112xbf16>, vector<112x96xbf16>, vector<24x96xf32> -> vector<24x96xf32>
    %42 = arith.addf %35, %41 : vector<24x96xf32>
    %c0_35 = arith.constant 0 : index
    %c1_36 = arith.constant 1 : index
    %c0_37 = arith.constant 0 : index
    %43 = vector.load %arg10[%c0_35, %c1_36, %c0_37] : memref<2x14x112xf32, #tpu.memory_space<vmem>>, vector<2x12x112xf32>
    %44 = vector.shape_cast %43 : vector<2x12x112xf32> to vector<24x112xf32>
    %45 = arith.truncf %44 : vector<24x112xf32> to vector<24x112xbf16>
    %c1_38 = arith.constant 1 : index
    %c0_39 = arith.constant 0 : index
    %c0_40 = arith.constant 0 : index
    %46 = vector.load %arg5[%c1_38, %c0_39, %c0_40] : memref<3x112x96xbf16, #tpu.memory_space<vmem>>, vector<1x112x96xbf16>
    %47 = vector.shape_cast %46 : vector<1x112x96xbf16> to vector<112x96xbf16>
    %cst_41 = arith.constant dense<0.000000e+00> : vector<24x96xf32>
    %48 = tpu.matmul %45, %47, %cst_41 {dimension_numbers = #tpu.dot_dimension_numbers<[1], [0], [0], [1], [0, 0, 1, 1], [], []>} : vector<24x112xbf16>, vector<112x96xbf16>, vector<24x96xf32> -> vector<24x96xf32>
    %49 = arith.addf %42, %48 : vector<24x96xf32>
    %c0_42 = arith.constant 0 : index
    %c2_43 = arith.constant 2 : index
    %c0_44 = arith.constant 0 : index
    %50 = vector.load %arg10[%c0_42, %c2_43, %c0_44] : memref<2x14x112xf32, #tpu.memory_space<vmem>>, vector<2x12x112xf32>
    %51 = vector.shape_cast %50 : vector<2x12x112xf32> to vector<24x112xf32>
    %52 = arith.truncf %51 : vector<24x112xf32> to vector<24x112xbf16>
    %c2_45 = arith.constant 2 : index
    %c0_46 = arith.constant 0 : index
    %c0_47 = arith.constant 0 : index
    %53 = vector.load %arg5[%c2_45, %c0_46, %c0_47] : memref<3x112x96xbf16, #tpu.memory_space<vmem>>, vector<1x112x96xbf16>
    %54 = vector.shape_cast %53 : vector<1x112x96xbf16> to vector<112x96xbf16>
    %cst_48 = arith.constant dense<0.000000e+00> : vector<24x96xf32>
    %55 = tpu.matmul %52, %54, %cst_48 {dimension_numbers = #tpu.dot_dimension_numbers<[1], [0], [0], [1], [0, 0, 1, 1], [], []>} : vector<24x112xbf16>, vector<112x96xbf16>, vector<24x96xf32> -> vector<24x96xf32>
    %56 = arith.addf %49, %55 : vector<24x96xf32>
    %c0_49 = arith.constant 0 : index
    %c0_50 = arith.constant 0 : index
    %57 = vector.load %arg6[%c0_49, %c0_50] : memref<1x96xf32, #tpu.memory_space<vmem>>, vector<1x96xf32>
    %58 = vector.broadcast %57 : vector<1x96xf32> to vector<24x96xf32>
    %59 = arith.mulf %56, %58 : vector<24x96xf32>
    %c0_51 = arith.constant 0 : index
    %c0_52 = arith.constant 0 : index
    %60 = vector.load %arg7[%c0_51, %c0_52] : memref<1x96xf32, #tpu.memory_space<vmem>>, vector<1x96xf32>
    %61 = vector.broadcast %60 : vector<1x96xf32> to vector<24x96xf32>
    %62 = arith.addf %59, %61 : vector<24x96xf32>
    %cst_53 = arith.constant 0.000000e+00 : f32
    %63 = vector.broadcast %cst_53 : f32 to vector<24x96xf32>
    %64 = arith.cmpf ogt, %62, %63 : vector<24x96xf32>
    %cst_54 = arith.constant 0.00999999977 : f32
    %65 = vector.broadcast %cst_54 : f32 to vector<24x96xf32>
    %66 = arith.mulf %65, %62 : vector<24x96xf32>
    %67 = arith.select %64, %62, %66 : vector<24x96xi1>, vector<24x96xf32>
    %68 = vector.shape_cast %67 : vector<24x96xf32> to vector<2x12x96xf32>
    %c0_55 = arith.constant 0 : index
    %c0_56 = arith.constant 0 : index
    %c0_57 = arith.constant 0 : index
    %69 = vector.load %arg8[%c0_55, %c0_56, %c0_57] : memref<2x12x96xf32, #tpu.memory_space<vmem>>, vector<2x12x96xf32>
    tpu.vector_store %arg8[%c0_55, %c0_56, %c0_57], %68 {strides = array<i32>} : memref<2x12x96xf32, #tpu.memory_space<vmem>>, vector<2x12x96xf32>,
    %70 = vector.shape_cast %68 : vector<2x12x96xf32> to vector<2x6x2x96xf32>
    %71 = vector.extract_strided_slice %70 {offsets = [0, 0, 0, 0], sizes = [2, 6, 1, 96], strides = [1, 1, 1, 1]} : vector<2x6x2x96xf32> to vector<2x6x1x96xf32>
    %72 = vector.shape_cast %71 : vector<2x6x1x96xf32> to vector<2x6x96xf32>
    %73 = vector.extract_strided_slice %70 {offsets = [0, 0, 1, 0], sizes = [2, 6, 1, 96], strides = [1, 1, 1, 1]} : vector<2x6x2x96xf32> to vector<2x6x1x96xf32>
    %74 = vector.shape_cast %73 : vector<2x6x1x96xf32> to vector<2x6x96xf32>
    %75 = arith.maximumf %72, %74 : vector<2x6x96xf32>
    %76 = vector.shape_cast %75 : vector<2x6x96xf32> to vector<2x6x6x16xf32>
    %77 = vector.extract_strided_slice %76 {offsets = [0, 0, 0, 0], sizes = [2, 6, 6, 8], strides = [1, 1, 1, 1]} : vector<2x6x6x16xf32> to vector<2x6x6x8xf32>
    %78 = vector.extract_strided_slice %76 {offsets = [0, 0, 0, 8], sizes = [2, 6, 6, 8], strides = [1, 1, 1, 1]} : vector<2x6x6x16xf32> to vector<2x6x6x8xf32>
    %79 = arith.maximumf %77, %78 : vector<2x6x6x8xf32>
    %80 = vector.shape_cast %79 : vector<2x6x6x8xf32> to vector<2x6x48xf32>
    %c0_58 = arith.constant 0 : index
    %c0_59 = arith.constant 0 : index
    %c0_60 = arith.constant 0 : index
    %81 = vector.load %arg9[%c0_58, %c0_59, %c0_60] : memref<2x6x48xf32, #tpu.memory_space<vmem>>, vector<2x6x48xf32>
    tpu.vector_store %arg9[%c0_58, %c0_59, %c0_60], %80 {strides = array<i32>} : memref<2x6x48xf32, #tpu.memory_space<vmem>>, vector<2x6x48xf32>,
    return
  }
  func.func @transform_0(%arg0: i32) -> (i32, i32, i32) {
    %c0_i32 = arith.constant 0 : i32
    %c0_i32_0 = arith.constant 0 : i32
    %c0_i32_1 = arith.constant 0 : i32
    %c0_i32_2 = arith.constant 0 : i32
    return %c0_i32, %c0_i32_0, %c0_i32_1 : i32, i32, i32
  }
  func.func @transform_1(%arg0: i32) -> (i32, i32, i32) {
    %c0_i32 = arith.constant 0 : i32
    %c0_i32_0 = arith.constant 0 : i32
    %c0_i32_1 = arith.constant 0 : i32
    %c0_i32_2 = arith.constant 0 : i32
    return %c0_i32, %c0_i32_0, %c0_i32_1 : i32, i32, i32
  }
  func.func @transform_2(%arg0: i32) -> (i32, i32) {
    %c0_i32 = arith.constant 0 : i32
    %c0_i32_0 = arith.constant 0 : i32
    %c0_i32_1 = arith.constant 0 : i32
    return %c0_i32, %c0_i32_0 : i32, i32
  }
  func.func @transform_3(%arg0: i32) -> (i32, i32) {
    %c0_i32 = arith.constant 0 : i32
    %c0_i32_0 = arith.constant 0 : i32
    %c0_i32_1 = arith.constant 0 : i32
    return %c0_i32, %c0_i32_0 : i32, i32
  }
  func.func @transform_4(%arg0: i32) -> (i32, i32, i32) {
    %c0_i32 = arith.constant 0 : i32
    %c0_i32_0 = arith.constant 0 : i32
    %c0_i32_1 = arith.constant 0 : i32
    %c0_i32_2 = arith.constant 0 : i32
    return %c0_i32, %c0_i32_0, %c0_i32_1 : i32, i32, i32
  }
  func.func @transform_5(%arg0: i32) -> (i32, i32) {
    %c0_i32 = arith.constant 0 : i32
    %c0_i32_0 = arith.constant 0 : i32
    %c0_i32_1 = arith.constant 0 : i32
    return %c0_i32, %c0_i32_0 : i32, i32
  }
  func.func @transform_6(%arg0: i32) -> (i32, i32) {
    %c0_i32 = arith.constant 0 : i32
    %c0_i32_0 = arith.constant 0 : i32
    %c0_i32_1 = arith.constant 0 : i32
    return %c0_i32, %c0_i32_0 : i32, i32
  }
  func.func @transform_7(%arg0: i32) -> (i32, i32, i32) {
    %c0_i32 = arith.constant 0 : i32
    %c0_i32_0 = arith.constant 0 : i32
    %c0_i32_1 = arith.constant 0 : i32
    %c0_i32_2 = arith.constant 0 : i32
    return %c0_i32, %c0_i32_0, %c0_i32_1 : i32, i32, i32
  }
  func.func @transform_8(%arg0: i32) -> (i32, i32, i32) {
    %c0_i32 = arith.constant 0 : i32
    %c0_i32_0 = arith.constant 0 : i32
    %c0_i32_1 = arith.constant 0 : i32
    %c0_i32_2 = arith.constant 0 : i32
    return %c0_i32, %c0_i32_0, %c0_i32_1 : i32, i32, i32
  }
}

</mosaic_0001>

<llo_original>
// kernel: tpu_custom_call.1
$region0: #{tpu_custom_call.1}
  #allocation0 [shape = 'u32[]', space=smem, size = 0x4, offset = 0x4, fixed_abs, tag = 'smem constant byte address 0x4 - core index']
  #allocation1 [shape = 'u32[144,128]{1,0:T(1,128)}', space=vmem, size = 0x12000, scoped, tag = 'internal scratch']
  #allocation2 [shape = 'f32[2,14,112]{2,1,0:T(8,128)}', space=vmem, size = 0x4000, scoped, tag = 'scratch operand']
  %s0 = inlined_call_operand.vmem [shape: f32[2,16,64], index: 0, kind: input, shape index: {}]
  %s1 = inlined_call_operand.vmem [shape: bf16[3,64,112], index: 1, kind: input, shape index: {}]
  %s2 = inlined_call_operand.vmem [shape: f32[1,112], index: 2, kind: input, shape index: {}]
  %s3 = inlined_call_operand.vmem [shape: f32[1,112], index: 3, kind: input, shape index: {}]
  %s4 = inlined_call_operand.vmem [shape: bf16[3,112,96], index: 4, kind: input, shape index: {}]
  %s5 = inlined_call_operand.vmem [shape: f32[1,96], index: 5, kind: input, shape index: {}]
  %s6 = inlined_call_operand.vmem [shape: f32[1,96], index: 6, kind: input, shape index: {}]
  %s7 = inlined_call_operand.vmem [shape: f32[2,12,96], index: 7, kind: output, shape index: {0}]
  %s8 = inlined_call_operand.vmem [shape: f32[2,6,48], index: 8, kind: output, shape index: {1}]
  %9 = xla_tuple %s7, %s8
  %s10 = sld [smem:[#allocation0]]
  $region46: #{tpu_custom_call.1} parent=0
    _
  %s12 = ssub.s32 1, %s10
  %s13 = scalar_select 0, %s12, %s10
  // Predicated region
  $region2: #{tpu_custom_call.1} parent=0 // pred_check
    _
  $region3: #{tpu_custom_call.1} parent=0 // pred_check_branch
    %15 = sbr.rel (0) target = $region5
  $region4: #{tpu_custom_call.1} parent=0 // pred_region
    _
  $region5: #{tpu_custom_call.1} parent=0 // pred_fallthru
    _
  // Predicated region
  $region6: #{tpu_custom_call.1} parent=0 // pred_check
    _
  $region7: #{tpu_custom_call.1} parent=0 // pred_check_branch
    %17 = sbr.rel (0) target = $region9
  $region8: #{tpu_custom_call.1} parent=0 // pred_region
    _
  $region9: #{tpu_custom_call.1} parent=0 // pred_fallthru
    _
  // Predicated region
  $region10: #{tpu_custom_call.1} parent=0 // pred_check
    _
  $region11: #{tpu_custom_call.1} parent=0 // pred_check_branch
    %19 = sbr.rel (0) target = $region13
  $region12: #{tpu_custom_call.1} parent=0 // pred_region
    _
  $region13: #{tpu_custom_call.1} parent=0 // pred_fallthru
    _
  // Predicated region
  $region14: #{tpu_custom_call.1} parent=0 // pred_check
    _
  $region15: #{tpu_custom_call.1} parent=0 // pred_check_branch
    %21 = sbr.rel (0) target = $region17
  $region16: #{tpu_custom_call.1} parent=0 // pred_region
    _
  $region17: #{tpu_custom_call.1} parent=0 // pred_fallthru
    _
  // Predicated region
  $region18: #{tpu_custom_call.1} parent=0 // pred_check
    _
  $region19: #{tpu_custom_call.1} parent=0 // pred_check_branch
    %23 = sbr.rel (0) target = $region21
  $region20: #{tpu_custom_call.1} parent=0 // pred_region
    _
  $region21: #{tpu_custom_call.1} parent=0 // pred_fallthru
    _
  // Predicated region
  $region22: #{tpu_custom_call.1} parent=0 // pred_check
    _
  $region23: #{tpu_custom_call.1} parent=0 // pred_check_branch
    %25 = sbr.rel (0) target = $region25
  $region24: #{tpu_custom_call.1} parent=0 // pred_region
    _
  $region25: #{tpu_custom_call.1} parent=0 // pred_fallthru
    _
  // Predicated region
  $region26: #{tpu_custom_call.1} parent=0 // pred_check
    _
  $region27: #{tpu_custom_call.1} parent=0 // pred_check_branch
    %27 = sbr.rel (0) target = $region29
  $region28: #{tpu_custom_call.1} parent=0 // pred_region
    _
  $region29: #{tpu_custom_call.1} parent=0 // pred_fallthru
    _
  %v29 = vld [vmem:[%s0] sm:$0xff]
  %v30 = vld [vmem:[%s0 + $0x8] sm:$0x3f]
  %v31 = vld [vmem:[%s0 + $0x10] sm:$0xff]
  %v32 = vld [vmem:[%s0 + $0x18] sm:$0x3f]
  %v37 = vcombine.high %v29, %v29
  %v39 = vunpack.c.l.s4 1983009808
  %v40 = vunpack.c.0.s8 %v39
  %v41 = vlaneseq
  %v42 = vshrl.u32 %v41, 7
  %v43 = vsub.s32 %v40, %v42
  %v44 = vrot.slane %v29, %v43
  %v46 = vunpack.c.l.s4 1983009808
  %v47 = vunpack.c.0.s8 %v46
  %v48 = vlaneseq
  %v49 = vshrl.u32 %v48, 7
  %v50 = vsub.s32 %v47, %v49
  %v51 = vrot.slane %v37, %v50
  %v52 = vcombine.high %v44, %v44
  %v53 = vcombine.high %v51, %v51
  %v54 = vcombine.high %v30, %v30
  %v56 = vunpack.c.l.s4 1983009808
  %v57 = vunpack.c.0.s8 %v56
  %v58 = vlaneseq
  %v59 = vshrl.u32 %v58, 7
  %v60 = vsub.s32 %v57, %v59
  %v61 = vrot.slane %v30, %v60
  %v63 = vunpack.c.l.s4 1983009808
  %v64 = vunpack.c.0.s8 %v63
  %v65 = vlaneseq
  %v66 = vshrl.u32 %v65, 7
  %v67 = vsub.s32 %v64, %v66
  %v68 = vrot.slane %v54, %v67
  %v69 = vcombine.high %v61, %v61
  %v70 = vcombine.high %v31, %v31
  %v72 = vunpack.c.l.s4 1983009808
  %v73 = vunpack.c.0.s8 %v72
  %v74 = vlaneseq
  %v75 = vshrl.u32 %v74, 7
  %v76 = vsub.s32 %v73, %v75
  %v77 = vrot.slane %v31, %v76
  %v79 = vunpack.c.l.s4 1983009808
  %v80 = vunpack.c.0.s8 %v79
  %v81 = vlaneseq
  %v82 = vshrl.u32 %v81, 7
  %v83 = vsub.s32 %v80, %v82
  %v84 = vrot.slane %v70, %v83
  %v85 = vcombine.high %v77, %v77
  %v86 = vcombine.high %v84, %v84
  %v87 = vcombine.high %v32, %v32
  %v89 = vunpack.c.l.s4 1983009808
  %v90 = vunpack.c.0.s8 %v89
  %v91 = vlaneseq
  %v92 = vshrl.u32 %v91, 7
  %v93 = vsub.s32 %v90, %v92
  %v94 = vrot.slane %v32, %v93
  %v96 = vunpack.c.l.s4 1983009808
  %v97 = vunpack.c.0.s8 %v96
  %v98 = vlaneseq
  %v99 = vshrl.u32 %v98, 7
  %v100 = vsub.s32 %v97, %v99
  %v101 = vrot.slane %v87, %v100
  %v102 = vcombine.high %v94, %v94
  %v103 = vcombine.low %v44, %v52
  %v104 = vcombine.low %v51, %v53
  %v106 = vunpack.c.l.s4 1983009808
  %v107 = vunpack.c.0.s8 %v106
  %v108 = vlaneseq
  %v109 = vshrl.u32 %v108, 7
  %v110 = vsub.s32 %v107, %v109
  %v111 = vrot.slane %v103, %v110
  %v113 = vunpack.c.l.s4 1983009808
  %v114 = vunpack.c.0.s8 %v113
  %v115 = vlaneseq
  %v116 = vshrl.u32 %v115, 7
  %v117 = vsub.s32 %v114, %v116
  %v118 = vrot.slane %v104, %v117
  %v119 = vcombine.low %v111, %v118
  %v120 = vcombine.low %v61, %v69
  %v121 = vcombine.low %v68, %v77
  %v123 = vunpack.c.l.s4 1983009808
  %v124 = vunpack.c.0.s8 %v123
  %v125 = vlaneseq
  %v126 = vshrl.u32 %v125, 7
  %v127 = vsub.s32 %v124, %v126
  %v128 = vrot.slane %v120, %v127
  %v130 = vunpack.c.l.s4 1983009808
  %v131 = vunpack.c.0.s8 %v130
  %v132 = vlaneseq
  %v133 = vshrl.u32 %v132, 7
  %v134 = vsub.s32 %v131, %v133
  %v135 = vrot.slane %v121, %v134
  %v136 = vcombine.low %v128, %v135
  %v137 = vcombine.low %v85, %v84
  %v138 = vcombine.low %v86, %v94
  %v140 = vunpack.c.l.s4 1983009808
  %v141 = vunpack.c.0.s8 %v140
  %v142 = vlaneseq
  %v143 = vshrl.u32 %v142, 7
  %v144 = vsub.s32 %v141, %v143
  %v145 = vrot.slane %v137, %v144
  %v147 = vunpack.c.l.s4 1983009808
  %v148 = vunpack.c.0.s8 %v147
  %v149 = vlaneseq
  %v150 = vshrl.u32 %v149, 7
  %v151 = vsub.s32 %v148, %v150
  %v152 = vrot.slane %v138, %v151
  %v153 = vcombine.low %v145, %v152
  %v154 = vcombine.low %v102, %v101
  %v156 = vunpack.c.l.s4 1983009808
  %v157 = vunpack.c.0.s8 %v156
  %v158 = vlaneseq
  %v159 = vshrl.u32 %v158, 7
  %v160 = vsub.s32 %v157, %v159
  %v161 = vrot.slane %v154, %v160
  %v166 = vpack.c.bf16 %v136, %v119
  %v167 = vpack.c.bf16 %v161, %v153
  %v168 = vld [vmem:[%s1] sm:$0xf]
  %v169 = vld [vmem:[%s1 + $0x4] sm:$0xf]
  %v170 = vld [vmem:[%s1 + $0x8] sm:$0xf]
  %v171 = vld [vmem:[%s1 + $0xc] sm:$0xf]
  %v172 = vld [vmem:[%s1 + $0x10] sm:$0xf]
  %v173 = vld [vmem:[%s1 + $0x14] sm:$0xf]
  %v174 = vld [vmem:[%s1 + $0x18] sm:$0xf]
  %v175 = vld [vmem:[%s1 + $0x1c] sm:$0xf]
  %v176 = vld [vmem:[%s0 + $0x1] sm:$0xff]
  %v177 = vld [vmem:[%s0 + $0x9] sm:$0x3f]
  %v178 = vld [vmem:[%s0 + $0x11] sm:$0xff]
  %v179 = vld [vmem:[%s0 + $0x19] sm:$0x3f]
  %v184 = vcombine.high %v176, %v176
  %v186 = vunpack.c.l.s4 1983009808
  %v187 = vunpack.c.0.s8 %v186
  %v188 = vlaneseq
  %v189 = vshrl.u32 %v188, 7
  %v190 = vsub.s32 %v187, %v189
  %v191 = vrot.slane %v176, %v190
  %v193 = vunpack.c.l.s4 1983009808
  %v194 = vunpack.c.0.s8 %v193
  %v195 = vlaneseq
  %v196 = vshrl.u32 %v195, 7
  %v197 = vsub.s32 %v194, %v196
  %v198 = vrot.slane %v184, %v197
  %v199 = vcombine.high %v191, %v191
  %v200 = vcombine.high %v198, %v198
  %v201 = vcombine.high %v177, %v177
  %v203 = vunpack.c.l.s4 1983009808
  %v204 = vunpack.c.0.s8 %v203
  %v205 = vlaneseq
  %v206 = vshrl.u32 %v205, 7
  %v207 = vsub.s32 %v204, %v206
  %v208 = vrot.slane %v177, %v207
  %v210 = vunpack.c.l.s4 1983009808
  %v211 = vunpack.c.0.s8 %v210
  %v212 = vlaneseq
  %v213 = vshrl.u32 %v212, 7
  %v214 = vsub.s32 %v211, %v213
  %v215 = vrot.slane %v201, %v214
  %v216 = vcombine.high %v208, %v208
  %v217 = vcombine.high %v178, %v178
  %v219 = vunpack.c.l.s4 1983009808
  %v220 = vunpack.c.0.s8 %v219
  %v221 = vlaneseq
  %v222 = vshrl.u32 %v221, 7
  %v223 = vsub.s32 %v220, %v222
  %v224 = vrot.slane %v178, %v223
  %v226 = vunpack.c.l.s4 1983009808
  %v227 = vunpack.c.0.s8 %v226
  %v228 = vlaneseq
  %v229 = vshrl.u32 %v228, 7
  %v230 = vsub.s32 %v227, %v229
  %v231 = vrot.slane %v217, %v230
  %v232 = vcombine.high %v224, %v224
  %v233 = vcombine.high %v231, %v231
  %v234 = vcombine.high %v179, %v179
  %v236 = vunpack.c.l.s4 1983009808
  %v237 = vunpack.c.0.s8 %v236
  %v238 = vlaneseq
  %v239 = vshrl.u32 %v238, 7
  %v240 = vsub.s32 %v237, %v239
  %v241 = vrot.slane %v179, %v240
  %v243 = vunpack.c.l.s4 1983009808
  %v244 = vunpack.c.0.s8 %v243
  %v245 = vlaneseq
  %v246 = vshrl.u32 %v245, 7
  %v247 = vsub.s32 %v244, %v246
  %v248 = vrot.slane %v234, %v247
  %v249 = vcombine.high %v241, %v241
  %v250 = vcombine.low %v191, %v199
  %v251 = vcombine.low %v198, %v200
  %v253 = vunpack.c.l.s4 1983009808
  %v254 = vunpack.c.0.s8 %v253
  %v255 = vlaneseq
  %v256 = vshrl.u32 %v255, 7
  %v257 = vsub.s32 %v254, %v256
  %v258 = vrot.slane %v250, %v257
  %v260 = vunpack.c.l.s4 1983009808
  %v261 = vunpack.c.0.s8 %v260
  %v262 = vlaneseq
  %v263 = vshrl.u32 %v262, 7
  %v264 = vsub.s32 %v261, %v263
  %v265 = vrot.slane %v251, %v264
  %v266 = vcombine.low %v258, %v265
  %v267 = vcombine.low %v208, %v216
  %v268 = vcombine.low %v215, %v224
  %v270 = vunpack.c.l.s4 1983009808
  %v271 = vunpack.c.0.s8 %v270
  %v272 = vlaneseq
  %v273 = vshrl.u32 %v272, 7
  %v274 = vsub.s32 %v271, %v273
  %v275 = vrot.slane %v267, %v274
  %v277 = vunpack.c.l.s4 1983009808
  %v278 = vunpack.c.0.s8 %v277
  %v279 = vlaneseq
  %v280 = vshrl.u32 %v279, 7
  %v281 = vsub.s32 %v278, %v280
  %v282 = vrot.slane %v268, %v281
  %v283 = vcombine.low %v275, %v282
  %v284 = vcombine.low %v232, %v231
  %v285 = vcombine.low %v233, %v241
  %v287 = vunpack.c.l.s4 1983009808
  %v288 = vunpack.c.0.s8 %v287
  %v289 = vlaneseq
  %v290 = vshrl.u32 %v289, 7
  %v291 = vsub.s32 %v288, %v290
  %v292 = vrot.slane %v284, %v291
  %v294 = vunpack.c.l.s4 1983009808
  %v295 = vunpack.c.0.s8 %v294
  %v296 = vlaneseq
  %v297 = vshrl.u32 %v296, 7
  %v298 = vsub.s32 %v295, %v297
  %v299 = vrot.slane %v285, %v298
  %v300 = vcombine.low %v292, %v299
  %v301 = vcombine.low %v249, %v248
  %v303 = vunpack.c.l.s4 1983009808
  %v304 = vunpack.c.0.s8 %v303
  %v305 = vlaneseq
  %v306 = vshrl.u32 %v305, 7
  %v307 = vsub.s32 %v304, %v306
  %v308 = vrot.slane %v301, %v307
  %v313 = vpack.c.bf16 %v283, %v266
  %v314 = vpack.c.bf16 %v308, %v300
  %s315 = scalar_lea.vmem %s1, 32
  %v316 = vld [vmem:[%s315] sm:$0xf]
  %v317 = vld [vmem:[%s315 + $0x4] sm:$0xf]
  %v318 = vld [vmem:[%s315 + $0x8] sm:$0xf]
  %v319 = vld [vmem:[%s315 + $0xc] sm:$0xf]
  %v320 = vld [vmem:[%s315 + $0x10] sm:$0xf]
  %v321 = vld [vmem:[%s315 + $0x14] sm:$0xf]
  %v322 = vld [vmem:[%s315 + $0x18] sm:$0xf]
  %v323 = vld [vmem:[%s315 + $0x1c] sm:$0xf]
  %v332 = vunpack.c.l.b16 %v316
  %v333 = vunpack.c.l.b16 %v317
  %v334 = vunpack.c.l.b16 %v318
  %v335 = vunpack.c.l.b16 %v319
  %v336 = vunpack.c.l.b16 %v320
  %v337 = vunpack.c.l.b16 %v321
  %v338 = vunpack.c.l.b16 %v322
  %v339 = vunpack.c.l.b16 %v323
  %v340 = vpack.c.b16 %v333, %v332
  %v341 = vpack.c.b16 %v335, %v334
  %v342 = vpack.c.b16 %v337, %v336
  %v343 = vpack.c.b16 %v339, %v338
  %vm348 = vcmask 523264
  %v350 = vsel %vm348, %v313, 0
  %v353 = vsel %vm348, %v314, 0
  %355 = vmatprep.subr.bf16.mxu0 0
  %356 = vmatpush1.bf16.msra.mxu0 0
  %357 = vmatprep.subr.bf16.mxu0 0
  %358 = vmatpush1.bf16.msra.mxu0 0
  %359 = vmatprep.subr.bf16.mxu0 0
  %360 = vmatpush1.bf16.msra.mxu0 0
  %361 = vmatprep.subr.bf16.mxu0 0
  %362 = vmatpush1.bf16.msra.mxu0 0
  %363 = vmatprep.subr.bf16.mxu0 0
  %364 = vmatpush1.bf16.msra.mxu0 %v343
  %365 = vmatprep.subr.bf16.mxu0 0
  %366 = vmatpush1.bf16.msra.mxu0 %v342
  %367 = vmatprep.subr.bf16.mxu0 0
  %368 = vmatpush1.bf16.msra.mxu0 %v341
  %369 = vmatprep.subr.bf16.mxu0 0
  %370 = vmatpush1.bf16.msra.mxu0 %v340
  %371 = vmatprep.subr.bf16.mxu0 0
  %372 = vmatpush2.bf16.msra.mxu0 0
  %373 = vmatprep.subr.bf16.mxu0 0
  %374 = vmatpush2.bf16.msra.mxu0 0
  %375 = vmatprep.subr.bf16.mxu0 0
  %376 = vmatpush2.bf16.msra.mxu0 0
  %377 = vmatprep.subr.bf16.mxu0 0
  %378 = vmatpush2.bf16.msra.mxu0 0
  %379 = vmatprep.subr.bf16.mxu0 0
  %380 = vmatpush2.bf16.msra.mxu0 0
  %381 = vmatprep.subr.bf16.mxu0 0
  %382 = vmatpush2.bf16.msra.mxu0 0
  %383 = vmatprep.subr.bf16.mxu0 0
  %384 = vmatpush2.bf16.msra.mxu0 0
  %385 = vmatprep.subr.bf16.mxu0 0
  %386 = vmatpush2.bf16.msra.mxu0 0
  %387 = vmatprep.mubr.bf16.mxu0 0
  %388 = vmatmul.mubr.bf16.gmra.mxu0 %v350
  %v389 = vpop.f32.mrf.mxu0
  %v390 = vadd.f32 0.0, %v389
  %v391 = vpop.f32.mrf.mxu0
  %v392 = vpop.f32.mrf.mxu0
  %v393 = vadd.f32 0.0, %v392
  %v394 = vpop.f32.mrf.mxu0
  %395 = vmatprep.mubr.bf16.mxu0 0
  %396 = vmatmul.mubr.bf16.gmra.mxu0 %v353
  %v397 = vpop.f32.mrf.mxu0
  %v398 = vadd.f32 0.0, %v397
  %v399 = vpop.f32.mrf.mxu0
  %v400 = vpop.f32.mrf.mxu0
  %v401 = vadd.f32 0.0, %v400
  %v402 = vpop.f32.mrf.mxu0
  %403 = vdwg.mxu0
  %v412 = vunpack.c.l.b16 %v168
  %v413 = vunpack.c.l.b16 %v169
  %v414 = vunpack.c.l.b16 %v170
  %v415 = vunpack.c.l.b16 %v171
  %v416 = vunpack.c.l.b16 %v172
  %v417 = vunpack.c.l.b16 %v173
  %v418 = vunpack.c.l.b16 %v174
  %v419 = vunpack.c.l.b16 %v175
  %v420 = vpack.c.b16 %v413, %v412
  %v421 = vpack.c.b16 %v415, %v414
  %v422 = vpack.c.b16 %v417, %v416
  %v423 = vpack.c.b16 %v419, %v418
  %v429 = vsel %vm348, %v166, 0
  %v432 = vsel %vm348, %v167, 0
  %434 = vmatprep.subr.bf16.mxu0 0
  %435 = vmatpush1.bf16.msra.mxu0 0
  %436 = vmatprep.subr.bf16.mxu0 0
  %437 = vmatpush1.bf16.msra.mxu0 0
  %438 = vmatprep.subr.bf16.mxu0 0
  %439 = vmatpush1.bf16.msra.mxu0 0
  %440 = vmatprep.subr.bf16.mxu0 0
  %441 = vmatpush1.bf16.msra.mxu0 0
  %442 = vmatprep.subr.bf16.mxu0 0
  %443 = vmatpush1.bf16.msra.mxu0 %v423
  %444 = vmatprep.subr.bf16.mxu0 0
  %445 = vmatpush1.bf16.msra.mxu0 %v422
  %446 = vmatprep.subr.bf16.mxu0 0
  %447 = vmatpush1.bf16.msra.mxu0 %v421
  %448 = vmatprep.subr.bf16.mxu0 0
  %449 = vmatpush1.bf16.msra.mxu0 %v420
  %450 = vmatprep.subr.bf16.mxu0 0
  %451 = vmatpush2.bf16.msra.mxu0 0
  %452 = vmatprep.subr.bf16.mxu0 0
  %453 = vmatpush2.bf16.msra.mxu0 0
  %454 = vmatprep.subr.bf16.mxu0 0
  %455 = vmatpush2.bf16.msra.mxu0 0
  %456 = vmatprep.subr.bf16.mxu0 0
  %457 = vmatpush2.bf16.msra.mxu0 0
  %458 = vmatprep.subr.bf16.mxu0 0
  %459 = vmatpush2.bf16.msra.mxu0 0
  %460 = vmatprep.subr.bf16.mxu0 0
  %461 = vmatpush2.bf16.msra.mxu0 0
  %462 = vmatprep.subr.bf16.mxu0 0
  %463 = vmatpush2.bf16.msra.mxu0 0
  %464 = vmatprep.subr.bf16.mxu0 0
  %465 = vmatpush2.bf16.msra.mxu0 0
  %466 = vmatprep.mubr.bf16.mxu0 0
  %467 = vmatmul.mubr.bf16.gmra.mxu0 %v429
  %v468 = vpop.f32.mrf.mxu0
  %v469 = vadd.f32 %v390, %v468
  %v470 = vpop.f32.mrf.mxu0
  %v471 = vpop.f32.mrf.mxu0
  %v472 = vadd.f32 %v393, %v471
  %v473 = vpop.f32.mrf.mxu0
  %474 = vmatprep.mubr.bf16.mxu0 0
  %475 = vmatmul.mubr.bf16.gmra.mxu0 %v432
  %v476 = vpop.f32.mrf.mxu0
  %v477 = vadd.f32 %v398, %v476
  %v478 = vpop.f32.mrf.mxu0
  %v479 = vpop.f32.mrf.mxu0
  %v480 = vadd.f32 %v401, %v479
  %v481 = vpop.f32.mrf.mxu0
  %482 = vdwg.mxu0
  %v483 = vld [vmem:[%s0 + $0x2] sm:$0xff]
  %v484 = vld [vmem:[%s0 + $0xa] sm:$0x3f]
  %v485 = vld [vmem:[%s0 + $0x12] sm:$0xff]
  %v486 = vld [vmem:[%s0 + $0x1a] sm:$0x3f]
  %v491 = vcombine.high %v483, %v483
  %v493 = vunpack.c.l.s4 1983009808
  %v494 = vunpack.c.0.s8 %v493
  %v495 = vlaneseq
  %v496 = vshrl.u32 %v495, 7
  %v497 = vsub.s32 %v494, %v496
  %v498 = vrot.slane %v483, %v497
  %v500 = vunpack.c.l.s4 1983009808
  %v501 = vunpack.c.0.s8 %v500
  %v502 = vlaneseq
  %v503 = vshrl.u32 %v502, 7
  %v504 = vsub.s32 %v501, %v503
  %v505 = vrot.slane %v491, %v504
  %v506 = vcombine.high %v498, %v498
  %v507 = vcombine.high %v505, %v505
  %v508 = vcombine.high %v484, %v484
  %v510 = vunpack.c.l.s4 1983009808
  %v511 = vunpack.c.0.s8 %v510
  %v512 = vlaneseq
  %v513 = vshrl.u32 %v512, 7
  %v514 = vsub.s32 %v511, %v513
  %v515 = vrot.slane %v484, %v514
  %v517 = vunpack.c.l.s4 1983009808
  %v518 = vunpack.c.0.s8 %v517
  %v519 = vlaneseq
  %v520 = vshrl.u32 %v519, 7
  %v521 = vsub.s32 %v518, %v520
  %v522 = vrot.slane %v508, %v521
  %v523 = vcombine.high %v515, %v515
  %v524 = vcombine.high %v485, %v485
  %v526 = vunpack.c.l.s4 1983009808
  %v527 = vunpack.c.0.s8 %v526
  %v528 = vlaneseq
  %v529 = vshrl.u32 %v528, 7
  %v530 = vsub.s32 %v527, %v529
  %v531 = vrot.slane %v485, %v530
  %v533 = vunpack.c.l.s4 1983009808
  %v534 = vunpack.c.0.s8 %v533
  %v535 = vlaneseq
  %v536 = vshrl.u32 %v535, 7
  %v537 = vsub.s32 %v534, %v536
  %v538 = vrot.slane %v524, %v537
  %v539 = vcombine.high %v531, %v531
  %v540 = vcombine.high %v538, %v538
  %v541 = vcombine.high %v486, %v486
  %v543 = vunpack.c.l.s4 1983009808
  %v544 = vunpack.c.0.s8 %v543
  %v545 = vlaneseq
  %v546 = vshrl.u32 %v545, 7
  %v547 = vsub.s32 %v544, %v546
  %v548 = vrot.slane %v486, %v547
  %v550 = vunpack.c.l.s4 1983009808
  %v551 = vunpack.c.0.s8 %v550
  %v552 = vlaneseq
  %v553 = vshrl.u32 %v552, 7
  %v554 = vsub.s32 %v551, %v553
  %v555 = vrot.slane %v541, %v554
  %v556 = vcombine.high %v548, %v548
  %v557 = vcombine.low %v498, %v506
  %v558 = vcombine.low %v505, %v507
  %v560 = vunpack.c.l.s4 1983009808
  %v561 = vunpack.c.0.s8 %v560
  %v562 = vlaneseq
  %v563 = vshrl.u32 %v562, 7
  %v564 = vsub.s32 %v561, %v563
  %v565 = vrot.slane %v557, %v564
  %v567 = vunpack.c.l.s4 1983009808
  %v568 = vunpack.c.0.s8 %v567
  %v569 = vlaneseq
  %v570 = vshrl.u32 %v569, 7
  %v571 = vsub.s32 %v568, %v570
  %v572 = vrot.slane %v558, %v571
  %v573 = vcombine.low %v565, %v572
  %v574 = vcombine.low %v515, %v523
  %v575 = vcombine.low %v522, %v531
  %v577 = vunpack.c.l.s4 1983009808
  %v578 = vunpack.c.0.s8 %v577
  %v579 = vlaneseq
  %v580 = vshrl.u32 %v579, 7
  %v581 = vsub.s32 %v578, %v580
  %v582 = vrot.slane %v574, %v581
  %v584 = vunpack.c.l.s4 1983009808
  %v585 = vunpack.c.0.s8 %v584
  %v586 = vlaneseq
  %v587 = vshrl.u32 %v586, 7
  %v588 = vsub.s32 %v585, %v587
  %v589 = vrot.slane %v575, %v588
  %v590 = vcombine.low %v582, %v589
  %v591 = vcombine.low %v539, %v538
  %v592 = vcombine.low %v540, %v548
  %v594 = vunpack.c.l.s4 1983009808
  %v595 = vunpack.c.0.s8 %v594
  %v596 = vlaneseq
  %v597 = vshrl.u32 %v596, 7
  %v598 = vsub.s32 %v595, %v597
  %v599 = vrot.slane %v591, %v598
  %v601 = vunpack.c.l.s4 1983009808
  %v602 = vunpack.c.0.s8 %v601
  %v603 = vlaneseq
  %v604 = vshrl.u32 %v603, 7
  %v605 = vsub.s32 %v602, %v604
  %v606 = vrot.slane %v592, %v605
  %v607 = vcombine.low %v599, %v606
  %v608 = vcombine.low %v556, %v555
  %v610 = vunpack.c.l.s4 1983009808
  %v611 = vunpack.c.0.s8 %v610
  %v612 = vlaneseq
  %v613 = vshrl.u32 %v612, 7
  %v614 = vsub.s32 %v611, %v613
  %v615 = vrot.slane %v608, %v614
  %v620 = vpack.c.bf16 %v590, %v573
  %v621 = vpack.c.bf16 %v615, %v607
  %s622 = scalar_lea.vmem %s1, 64
  %v623 = vld [vmem:[%s622] sm:$0xf]
  %v624 = vld [vmem:[%s622 + $0x4] sm:$0xf]
  %v625 = vld [vmem:[%s622 + $0x8] sm:$0xf]
  %v626 = vld [vmem:[%s622 + $0xc] sm:$0xf]
  %v627 = vld [vmem:[%s622 + $0x10] sm:$0xf]
  %v628 = vld [vmem:[%s622 + $0x14] sm:$0xf]
  %v629 = vld [vmem:[%s622 + $0x18] sm:$0xf]
  %v630 = vld [vmem:[%s622 + $0x1c] sm:$0xf]
  %v639 = vunpack.c.l.b16 %v623
  %v640 = vunpack.c.l.b16 %v624
  %v641 = vunpack.c.l.b16 %v625
  %v642 = vunpack.c.l.b16 %v626
  %v643 = vunpack.c.l.b16 %v627
  %v644 = vunpack.c.l.b16 %v628
  %v645 = vunpack.c.l.b16 %v629
  %v646 = vunpack.c.l.b16 %v630
  %v647 = vpack.c.b16 %v640, %v639
  %v648 = vpack.c.b16 %v642, %v641
  %v649 = vpack.c.b16 %v644, %v643
  %v650 = vpack.c.b16 %v646, %v645
  %v656 = vsel %vm348, %v620, 0
  %v659 = vsel %vm348, %v621, 0
  %661 = vmatprep.subr.bf16.mxu0 0
  %662 = vmatpush1.bf16.msra.mxu0 0
  %663 = vmatprep.subr.bf16.mxu0 0
  %664 = vmatpush1.bf16.msra.mxu0 0
  %665 = vmatprep.subr.bf16.mxu0 0
  %666 = vmatpush1.bf16.msra.mxu0 0
  %667 = vmatprep.subr.bf16.mxu0 0
  %668 = vmatpush1.bf16.msra.mxu0 0
  %669 = vmatprep.subr.bf16.mxu0 0
  %670 = vmatpush1.bf16.msra.mxu0 %v650
  %671 = vmatprep.subr.bf16.mxu0 0
  %672 = vmatpush1.bf16.msra.mxu0 %v649
  %673 = vmatprep.subr.bf16.mxu0 0
  %674 = vmatpush1.bf16.msra.mxu0 %v648
  %675 = vmatprep.subr.bf16.mxu0 0
  %676 = vmatpush1.bf16.msra.mxu0 %v647
  %677 = vmatprep.subr.bf16.mxu0 0
  %678 = vmatpush2.bf16.msra.mxu0 0
  %679 = vmatprep.subr.bf16.mxu0 0
  %680 = vmatpush2.bf16.msra.mxu0 0
  %681 = vmatprep.subr.bf16.mxu0 0
  %682 = vmatpush2.bf16.msra.mxu0 0
  %683 = vmatprep.subr.bf16.mxu0 0
  %684 = vmatpush2.bf16.msra.mxu0 0
  %685 = vmatprep.subr.bf16.mxu0 0
  %686 = vmatpush2.bf16.msra.mxu0 0
  %687 = vmatprep.subr.bf16.mxu0 0
  %688 = vmatpush2.bf16.msra.mxu0 0
  %689 = vmatprep.subr.bf16.mxu0 0
  %690 = vmatpush2.bf16.msra.mxu0 0
  %691 = vmatprep.subr.bf16.mxu0 0
  %692 = vmatpush2.bf16.msra.mxu0 0
  %693 = vmatprep.mubr.bf16.mxu0 0
  %694 = vmatmul.mubr.bf16.gmra.mxu0 %v656
  %v695 = vpop.f32.mrf.mxu0
  %v696 = vadd.f32 0.0, %v695
  %v697 = vpop.f32.mrf.mxu0
  %v698 = vpop.f32.mrf.mxu0
  %v699 = vadd.f32 0.0, %v698
  %v700 = vpop.f32.mrf.mxu0
  %701 = vmatprep.mubr.bf16.mxu0 0
  %702 = vmatmul.mubr.bf16.gmra.mxu0 %v659
  %v703 = vpop.f32.mrf.mxu0
  %v704 = vadd.f32 0.0, %v703
  %v705 = vpop.f32.mrf.mxu0
  %v706 = vpop.f32.mrf.mxu0
  %v707 = vadd.f32 0.0, %v706
  %v708 = vpop.f32.mrf.mxu0
  %709 = vdwg.mxu0
  %v710 = vadd.f32 %v469, %v696
  %v711 = vadd.f32 %v472, %v699
  %v712 = vadd.f32 %v477, %v704
  %v713 = vadd.f32 %v480, %v707
  %v714 = vld [vmem:[%s2] sm:$0x1]
  %v716 = vlaneseq
  %v717 = vshrl.u32 %v716, 7
  %v718 = vsub.s32 0, %v717
  %v719 = vrot.slane %v714, %v718
  %v721 = vmul.f32 %v710, %v719
  %v722 = vmul.f32 %v711, %v719
  %v723 = vmul.f32 %v712, %v719
  %v724 = vmul.f32 %v713, %v719
  %v725 = vld [vmem:[%s3] sm:$0x1]
  %v727 = vlaneseq
  %v728 = vshrl.u32 %v727, 7
  %v729 = vsub.s32 0, %v728
  %v730 = vrot.slane %v725, %v729
  %v732 = vadd.f32 %v721, %v730
  %v733 = vadd.f32 %v722, %v730
  %v734 = vadd.f32 %v723, %v730
  %v735 = vadd.f32 %v724, %v730
  %vm736 = vcmp.gt.f32.partialorder %v732, 0.0
  %vm737 = vcmp.gt.f32.partialorder %v733, 0.0
  %vm738 = vcmp.gt.f32.partialorder %v734, 0.0
  %vm739 = vcmp.gt.f32.partialorder %v735, 0.0
  %v740 = vmul.f32 %v732, 0.01
  %v741 = vmul.f32 %v733, 0.01
  %v742 = vmul.f32 %v734, 0.01
  %v743 = vmul.f32 %v735, 0.01
  %v744 = vsel %vm736, %v732, %v740
  %v745 = vsel %vm737, %v733, %v741
  %v746 = vsel %vm738, %v734, %v742
  %v747 = vsel %vm739, %v735, %v743
  %v752 = vcombine.high %v744, %v744
  %v754 = vunpack.c.l.s4 1983009808
  %v755 = vunpack.c.0.s8 %v754
  %v756 = vlaneseq
  %v757 = vshrl.u32 %v756, 7
  %v758 = vsub.s32 %v755, %v757
  %v759 = vrot.slane %v744, %v758
  %v761 = vunpack.c.l.s4 1983009808
  %v762 = vunpack.c.0.s8 %v761
  %v763 = vlaneseq
  %v764 = vshrl.u32 %v763, 7
  %v765 = vsub.s32 %v762, %v764
  %v766 = vrot.slane %v752, %v765
  %v767 = vcombine.high %v759, %v759
  %v768 = vcombine.high %v766, %v766
  %v769 = vcombine.high %v745, %v745
  %v771 = vunpack.c.l.s4 1983009808
  %v772 = vunpack.c.0.s8 %v771
  %v773 = vlaneseq
  %v774 = vshrl.u32 %v773, 7
  %v775 = vsub.s32 %v772, %v774
  %v776 = vrot.slane %v745, %v775
  %v778 = vunpack.c.l.s4 1983009808
  %v779 = vunpack.c.0.s8 %v778
  %v780 = vlaneseq
  %v781 = vshrl.u32 %v780, 7
  %v782 = vsub.s32 %v779, %v781
  %v783 = vrot.slane %v769, %v782
  %v784 = vcombine.high %v776, %v776
  %v785 = vcombine.high %v783, %v783
  %v786 = vcombine.high %v746, %v746
  %v788 = vunpack.c.l.s4 1983009808
  %v789 = vunpack.c.0.s8 %v788
  %v790 = vlaneseq
  %v791 = vshrl.u32 %v790, 7
  %v792 = vsub.s32 %v789, %v791
  %v793 = vrot.slane %v746, %v792
  %v795 = vunpack.c.l.s4 1983009808
  %v796 = vunpack.c.0.s8 %v795
  %v797 = vlaneseq
  %v798 = vshrl.u32 %v797, 7
  %v799 = vsub.s32 %v796, %v798
  %v800 = vrot.slane %v786, %v799
  %v801 = vcombine.high %v793, %v793
  %v802 = vcombine.high %v800, %v800
  %v804 = vunpack.c.l.s4 1983009808
  %v805 = vunpack.c.0.s8 %v804
  %v806 = vlaneseq
  %v807 = vshrl.u32 %v806, 7
  %v808 = vsub.s32 %v805, %v807
  %v809 = vrot.slane %v747, %v808
  %v810 = vcombine.high %v809, %v809
  %v811 = vcombine.low %v759, %v767
  %v812 = vcombine.low %v766, %v768
  %v814 = vunpack.c.l.s4 1983009808
  %v815 = vunpack.c.0.s8 %v814
  %v816 = vlaneseq
  %v817 = vshrl.u32 %v816, 7
  %v818 = vsub.s32 %v815, %v817
  %v819 = vrot.slane %v811, %v818
  %v821 = vunpack.c.l.s4 1983009808
  %v822 = vunpack.c.0.s8 %v821
  %v823 = vlaneseq
  %v824 = vshrl.u32 %v823, 7
  %v825 = vsub.s32 %v822, %v824
  %v826 = vrot.slane %v812, %v825
  %v827 = vcombine.low %v819, %v826
  %v828 = vcombine.low %v776, %v784
  %v830 = vunpack.c.l.s4 1983009808
  %v831 = vunpack.c.0.s8 %v830
  %v832 = vlaneseq
  %v833 = vshrl.u32 %v832, 7
  %v834 = vsub.s32 %v831, %v833
  %v835 = vrot.slane %v828, %v834
  %v837 = vunpack.c.l.s4 1983009808
  %v838 = vunpack.c.0.s8 %v837
  %v839 = vlaneseq
  %v840 = vshrl.u32 %v839, 7
  %v841 = vsub.s32 %v838, %v840
  %v842 = vrot.slane %v783, %v841
  %v843 = vcombine.low %v835, %v842
  %v844 = vcombine.low %v785, %v793
  %v845 = vcombine.low %v801, %v800
  %v847 = vunpack.c.l.s4 1983009808
  %v848 = vunpack.c.0.s8 %v847
  %v849 = vlaneseq
  %v850 = vshrl.u32 %v849, 7
  %v851 = vsub.s32 %v848, %v850
  %v852 = vrot.slane %v844, %v851
  %v854 = vunpack.c.l.s4 1983009808
  %v855 = vunpack.c.0.s8 %v854
  %v856 = vlaneseq
  %v857 = vshrl.u32 %v856, 7
  %v858 = vsub.s32 %v855, %v857
  %v859 = vrot.slane %v845, %v858
  %v860 = vcombine.low %v852, %v859
  %v861 = vcombine.low %v802, %v809
  %v863 = vunpack.c.l.s4 1983009808
  %v864 = vunpack.c.0.s8 %v863
  %v865 = vlaneseq
  %v866 = vshrl.u32 %v865, 7
  %v867 = vsub.s32 %v864, %v866
  %v868 = vrot.slane %v861, %v867
  %v870 = vunpack.c.l.s4 1983009808
  %v871 = vunpack.c.0.s8 %v870
  %v872 = vlaneseq
  %v873 = vshrl.u32 %v872, 7
  %v874 = vsub.s32 %v871, %v873
  %v875 = vrot.slane %v810, %v874
  %v876 = vcombine.low %v868, %v875
  %vm881 = vcmask 916480
  %882 = vst.msk [vmem:[#allocation2] sm:$0xff] %vm881, %v827
  %vm883 = vcmask 914432
  %884 = vst.msk [vmem:[#allocation2 + $0x8] sm:$0x3f] %vm883, %v843
  %885 = vst.msk [vmem:[#allocation2 + $0x10] sm:$0xff] %vm881, %v860
  %886 = vst.msk [vmem:[#allocation2 + $0x18] sm:$0x3f] %vm883, %v876
  %v887 = vld [vmem:[#allocation2] sm:$0xff]
  %v888 = vld [vmem:[#allocation2 + $0x8] sm:$0xf]
  %v889 = vld [vmem:[#allocation2 + $0x10] sm:$0xff]
  %v890 = vld [vmem:[#allocation2 + $0x18] sm:$0xf]
  %v895 = vcombine.high %v887, %v887
  %v896 = vcombine.high %v889, %v889
  %v897 = vcombine.low %v887, %v895
  %v898 = vcombine.low %v888, %v889
  %v899 = vcombine.low %v896, %v890
  %v903 = vpack.c.bf16 %v898, %v897
  %v904 = vpack.c.bf16 %v899, %v899
  %v905 = vld [vmem:[%s4] sm:$0xf]
  %v906 = vld [vmem:[%s4 + $0x4] sm:$0xf]
  %v907 = vld [vmem:[%s4 + $0x8] sm:$0xf]
  %v908 = vld [vmem:[%s4 + $0xc] sm:$0xf]
  %v909 = vld [vmem:[%s4 + $0x10] sm:$0xf]
  %v910 = vld [vmem:[%s4 + $0x14] sm:$0xf]
  %v911 = vld [vmem:[%s4 + $0x18] sm:$0xf]
  %v912 = vld [vmem:[%s4 + $0x1c] sm:$0xf]
  %v913 = vld [vmem:[%s4 + $0x20] sm:$0xf]
  %v914 = vld [vmem:[%s4 + $0x24] sm:$0xf]
  %v915 = vld [vmem:[%s4 + $0x28] sm:$0xf]
  %v916 = vld [vmem:[%s4 + $0x2c] sm:$0xf]
  %v917 = vld [vmem:[%s4 + $0x30] sm:$0xf]
  %v918 = vld [vmem:[%s4 + $0x34] sm:$0xf]
  %v919 = vld [vmem:[#allocation2 + $0x1] sm:$0xff]
  %v920 = vld [vmem:[#allocation2 + $0x9] sm:$0xf]
  %v921 = vld [vmem:[#allocation2 + $0x11] sm:$0xff]
  %v922 = vld [vmem:[#allocation2 + $0x19] sm:$0xf]
  %v927 = vcombine.high %v919, %v919
  %v928 = vcombine.high %v921, %v921
  %v929 = vcombine.low %v919, %v927
  %v930 = vcombine.low %v920, %v921
  %v931 = vcombine.low %v928, %v922
  %v935 = vpack.c.bf16 %v930, %v929
  %v936 = vpack.c.bf16 %v931, %v931
  %s937 = scalar_lea.vmem %s4, 56
  %v938 = vld [vmem:[%s937] sm:$0xf]
  %v939 = vld [vmem:[%s937 + $0x4] sm:$0xf]
  %v940 = vld [vmem:[%s937 + $0x8] sm:$0xf]
  %v941 = vld [vmem:[%s937 + $0xc] sm:$0xf]
  %v942 = vld [vmem:[%s937 + $0x10] sm:$0xf]
  %v943 = vld [vmem:[%s937 + $0x14] sm:$0xf]
  %v944 = vld [vmem:[%s937 + $0x18] sm:$0xf]
  %v945 = vld [vmem:[%s937 + $0x1c] sm:$0xf]
  %v946 = vld [vmem:[%s937 + $0x20] sm:$0xf]
  %v947 = vld [vmem:[%s937 + $0x24] sm:$0xf]
  %v948 = vld [vmem:[%s937 + $0x28] sm:$0xf]
  %v949 = vld [vmem:[%s937 + $0x2c] sm:$0xf]
  %v950 = vld [vmem:[%s937 + $0x30] sm:$0xf]
  %v951 = vld [vmem:[%s937 + $0x34] sm:$0xf]
  %v966 = vunpack.c.l.b16 %v938
  %v967 = vunpack.c.l.b16 %v939
  %v968 = vunpack.c.l.b16 %v940
  %v969 = vunpack.c.l.b16 %v941
  %v970 = vunpack.c.l.b16 %v942
  %v971 = vunpack.c.l.b16 %v943
  %v972 = vunpack.c.l.b16 %v944
  %v973 = vunpack.c.l.b16 %v945
  %v974 = vunpack.c.l.b16 %v946
  %v975 = vunpack.c.l.b16 %v947
  %v976 = vunpack.c.l.b16 %v948
  %v977 = vunpack.c.l.b16 %v949
  %v978 = vunpack.c.l.b16 %v950
  %v979 = vunpack.c.l.b16 %v951
  %v980 = vpack.c.b16 %v967, %v966
  %v981 = vpack.c.b16 %v969, %v968
  %v982 = vpack.c.b16 %v971, %v970
  %v983 = vpack.c.b16 %v973, %v972
  %v984 = vpack.c.b16 %v975, %v974
  %v985 = vpack.c.b16 %v977, %v976
  %v986 = vpack.c.b16 %v979, %v978
  %v995 = vsel %vm881, %v935, 0
  %v998 = vsel %vm881, %v936, 0
  %1000 = vmatprep.subr.bf16.mxu0 0
  %1001 = vmatpush1.bf16.msra.mxu0 0
  %1002 = vmatprep.subr.bf16.mxu0 0
  %1003 = vmatpush1.bf16.msra.mxu0 %v986
  %1004 = vmatprep.subr.bf16.mxu0 0
  %1005 = vmatpush1.bf16.msra.mxu0 %v985
  %1006 = vmatprep.subr.bf16.mxu0 0
  %1007 = vmatpush1.bf16.msra.mxu0 %v984
  %1008 = vmatprep.subr.bf16.mxu0 0
  %1009 = vmatpush1.bf16.msra.mxu0 %v983
  %1010 = vmatprep.subr.bf16.mxu0 0
  %1011 = vmatpush1.bf16.msra.mxu0 %v982
  %1012 = vmatprep.subr.bf16.mxu0 0
  %1013 = vmatpush1.bf16.msra.mxu0 %v981
  %1014 = vmatprep.subr.bf16.mxu0 0
  %1015 = vmatpush1.bf16.msra.mxu0 %v980
  %1016 = vmatprep.subr.bf16.mxu0 0
  %1017 = vmatpush2.bf16.msra.mxu0 0
  %1018 = vmatprep.subr.bf16.mxu0 0
  %1019 = vmatpush2.bf16.msra.mxu0 0
  %1020 = vmatprep.subr.bf16.mxu0 0
  %1021 = vmatpush2.bf16.msra.mxu0 0
  %1022 = vmatprep.subr.bf16.mxu0 0
  %1023 = vmatpush2.bf16.msra.mxu0 0
  %1024 = vmatprep.subr.bf16.mxu0 0
  %1025 = vmatpush2.bf16.msra.mxu0 0
  %1026 = vmatprep.subr.bf16.mxu0 0
  %1027 = vmatpush2.bf16.msra.mxu0 0
  %1028 = vmatprep.subr.bf16.mxu0 0
  %1029 = vmatpush2.bf16.msra.mxu0 0
  %1030 = vmatprep.subr.bf16.mxu0 0
  %1031 = vmatpush2.bf16.msra.mxu0 0
  %1032 = vmatprep.mubr.bf16.mxu0 0
  %1033 = vmatmul.mubr.bf16.gmra.mxu0 %v995
  %v1034 = vpop.f32.mrf.mxu0
  %v1035 = vadd.f32 0.0, %v1034
  %v1036 = vpop.f32.mrf.mxu0
  %v1037 = vpop.f32.mrf.mxu0
  %v1038 = vadd.f32 0.0, %v1037
  %v1039 = vpop.f32.mrf.mxu0
  %1040 = vmatprep.mubr.bf16.mxu0 0
  %1041 = vmatmul.mubr.bf16.gmra.mxu0 %v998
  %v1042 = vpop.f32.mrf.mxu0
  %v1043 = vadd.f32 0.0, %v1042
  %v1044 = vpop.f32.mrf.mxu0
  %v1045 = vpop.f32.mrf.mxu0
  %v1046 = vpop.f32.mrf.mxu0
  %1047 = vdwg.mxu0
  %v1062 = vunpack.c.l.b16 %v905
  %v1063 = vunpack.c.l.b16 %v906
  %v1064 = vunpack.c.l.b16 %v907
  %v1065 = vunpack.c.l.b16 %v908
  %v1066 = vunpack.c.l.b16 %v909
  %v1067 = vunpack.c.l.b16 %v910
  %v1068 = vunpack.c.l.b16 %v911
  %v1069 = vunpack.c.l.b16 %v912
  %v1070 = vunpack.c.l.b16 %v913
  %v1071 = vunpack.c.l.b16 %v914
  %v1072 = vunpack.c.l.b16 %v915
  %v1073 = vunpack.c.l.b16 %v916
  %v1074 = vunpack.c.l.b16 %v917
  %v1075 = vunpack.c.l.b16 %v918
  %v1076 = vpack.c.b16 %v1063, %v1062
  %v1077 = vpack.c.b16 %v1065, %v1064
  %v1078 = vpack.c.b16 %v1067, %v1066
  %v1079 = vpack.c.b16 %v1069, %v1068
  %v1080 = vpack.c.b16 %v1071, %v1070
  %v1081 = vpack.c.b16 %v1073, %v1072
  %v1082 = vpack.c.b16 %v1075, %v1074
  %v1091 = vsel %vm881, %v903, 0
  %v1094 = vsel %vm881, %v904, 0
  %1096 = vmatprep.subr.bf16.mxu0 0
  %1097 = vmatpush1.bf16.msra.mxu0 0
  %1098 = vmatprep.subr.bf16.mxu0 0
  %1099 = vmatpush1.bf16.msra.mxu0 %v1082
  %1100 = vmatprep.subr.bf16.mxu0 0
  %1101 = vmatpush1.bf16.msra.mxu0 %v1081
  %1102 = vmatprep.subr.bf16.mxu0 0
  %1103 = vmatpush1.bf16.msra.mxu0 %v1080
  %1104 = vmatprep.subr.bf16.mxu0 0
  %1105 = vmatpush1.bf16.msra.mxu0 %v1079
  %1106 = vmatprep.subr.bf16.mxu0 0
  %1107 = vmatpush1.bf16.msra.mxu0 %v1078
  %1108 = vmatprep.subr.bf16.mxu0 0
  %1109 = vmatpush1.bf16.msra.mxu0 %v1077
  %1110 = vmatprep.subr.bf16.mxu0 0
  %1111 = vmatpush1.bf16.msra.mxu0 %v1076
  %1112 = vmatprep.subr.bf16.mxu0 0
  %1113 = vmatpush2.bf16.msra.mxu0 0
  %1114 = vmatprep.subr.bf16.mxu0 0
  %1115 = vmatpush2.bf16.msra.mxu0 0
  %1116 = vmatprep.subr.bf16.mxu0 0
  %1117 = vmatpush2.bf16.msra.mxu0 0
  %1118 = vmatprep.subr.bf16.mxu0 0
  %1119 = vmatpush2.bf16.msra.mxu0 0
  %1120 = vmatprep.subr.bf16.mxu0 0
  %1121 = vmatpush2.bf16.msra.mxu0 0
  %1122 = vmatprep.subr.bf16.mxu0 0
  %1123 = vmatpush2.bf16.msra.mxu0 0
  %1124 = vmatprep.subr.bf16.mxu0 0
  %1125 = vmatpush2.bf16.msra.mxu0 0
  %1126 = vmatprep.subr.bf16.mxu0 0
  %1127 = vmatpush2.bf16.msra.mxu0 0
  %1128 = vmatprep.mubr.bf16.mxu0 0
  %1129 = vmatmul.mubr.bf16.gmra.mxu0 %v1091
  %v1130 = vpop.f32.mrf.mxu0
  %v1131 = vadd.f32 %v1035, %v1130
  %v1132 = vpop.f32.mrf.mxu0
  %v1133 = vpop.f32.mrf.mxu0
  %v1134 = vadd.f32 %v1038, %v1133
  %v1135 = vpop.f32.mrf.mxu0
  %1136 = vmatprep.mubr.bf16.mxu0 0
  %1137 = vmatmul.mubr.bf16.gmra.mxu0 %v1094
  %v1138 = vpop.f32.mrf.mxu0
  %v1139 = vadd.f32 %v1043, %v1138
  %v1140 = vpop.f32.mrf.mxu0
  %v1141 = vpop.f32.mrf.mxu0
  %v1142 = vpop.f32.mrf.mxu0
  %1143 = vdwg.mxu0
  %v1144 = vld [vmem:[#allocation2 + $0x2] sm:$0xff]
  %v1145 = vld [vmem:[#allocation2 + $0xa] sm:$0xf]
  %v1146 = vld [vmem:[#allocation2 + $0x12] sm:$0xff]
  %v1147 = vld [vmem:[#allocation2 + $0x1a] sm:$0xf]
  %v1152 = vcombine.high %v1144, %v1144
  %v1153 = vcombine.high %v1146, %v1146
  %v1154 = vcombine.low %v1144, %v1152
  %v1155 = vcombine.low %v1145, %v1146
  %v1156 = vcombine.low %v1153, %v1147
  %v1160 = vpack.c.bf16 %v1155, %v1154
  %v1161 = vpack.c.bf16 %v1156, %v1156
  %s1162 = scalar_lea.vmem %s4, 112
  %v1163 = vld [vmem:[%s1162] sm:$0xf]
  %v1164 = vld [vmem:[%s1162 + $0x4] sm:$0xf]
  %v1165 = vld [vmem:[%s1162 + $0x8] sm:$0xf]
  %v1166 = vld [vmem:[%s1162 + $0xc] sm:$0xf]
  %v1167 = vld [vmem:[%s1162 + $0x10] sm:$0xf]
  %v1168 = vld [vmem:[%s1162 + $0x14] sm:$0xf]
  %v1169 = vld [vmem:[%s1162 + $0x18] sm:$0xf]
  %v1170 = vld [vmem:[%s1162 + $0x1c] sm:$0xf]
  %v1171 = vld [vmem:[%s1162 + $0x20] sm:$0xf]
  %v1172 = vld [vmem:[%s1162 + $0x24] sm:$0xf]
  %v1173 = vld [vmem:[%s1162 + $0x28] sm:$0xf]
  %v1174 = vld [vmem:[%s1162 + $0x2c] sm:$0xf]
  %v1175 = vld [vmem:[%s1162 + $0x30] sm:$0xf]
  %v1176 = vld [vmem:[%s1162 + $0x34] sm:$0xf]
  %v1191 = vunpack.c.l.b16 %v1163
  %v1192 = vunpack.c.l.b16 %v1164
  %v1193 = vunpack.c.l.b16 %v1165
  %v1194 = vunpack.c.l.b16 %v1166
  %v1195 = vunpack.c.l.b16 %v1167
  %v1196 = vunpack.c.l.b16 %v1168
  %v1197 = vunpack.c.l.b16 %v1169
  %v1198 = vunpack.c.l.b16 %v1170
  %v1199 = vunpack.c.l.b16 %v1171
  %v1200 = vunpack.c.l.b16 %v1172
  %v1201 = vunpack.c.l.b16 %v1173
  %v1202 = vunpack.c.l.b16 %v1174
  %v1203 = vunpack.c.l.b16 %v1175
  %v1204 = vunpack.c.l.b16 %v1176
  %v1205 = vpack.c.b16 %v1192, %v1191
  %v1206 = vpack.c.b16 %v1194, %v1193
  %v1207 = vpack.c.b16 %v1196, %v1195
  %v1208 = vpack.c.b16 %v1198, %v1197
  %v1209 = vpack.c.b16 %v1200, %v1199
  %v1210 = vpack.c.b16 %v1202, %v1201
  %v1211 = vpack.c.b16 %v1204, %v1203
  %v1220 = vsel %vm881, %v1160, 0
  %v1223 = vsel %vm881, %v1161, 0
  %1225 = vmatprep.subr.bf16.mxu0 0
  %1226 = vmatpush1.bf16.msra.mxu0 0
  %1227 = vmatprep.subr.bf16.mxu0 0
  %1228 = vmatpush1.bf16.msra.mxu0 %v1211
  %1229 = vmatprep.subr.bf16.mxu0 0
  %1230 = vmatpush1.bf16.msra.mxu0 %v1210
  %1231 = vmatprep.subr.bf16.mxu0 0
  %1232 = vmatpush1.bf16.msra.mxu0 %v1209
  %1233 = vmatprep.subr.bf16.mxu0 0
  %1234 = vmatpush1.bf16.msra.mxu0 %v1208
  %1235 = vmatprep.subr.bf16.mxu0 0
  %1236 = vmatpush1.bf16.msra.mxu0 %v1207
  %1237 = vmatprep.subr.bf16.mxu0 0
  %1238 = vmatpush1.bf16.msra.mxu0 %v1206
  %1239 = vmatprep.subr.bf16.mxu0 0
  %1240 = vmatpush1.bf16.msra.mxu0 %v1205
  %1241 = vmatprep.subr.bf16.mxu0 0
  %1242 = vmatpush2.bf16.msra.mxu0 0
  %1243 = vmatprep.subr.bf16.mxu0 0
  %1244 = vmatpush2.bf16.msra.mxu0 0
  %1245 = vmatprep.subr.bf16.mxu0 0
  %1246 = vmatpush2.bf16.msra.mxu0 0
  %1247 = vmatprep.subr.bf16.mxu0 0
  %1248 = vmatpush2.bf16.msra.mxu0 0
  %1249 = vmatprep.subr.bf16.mxu0 0
  %1250 = vmatpush2.bf16.msra.mxu0 0
  %1251 = vmatprep.subr.bf16.mxu0 0
  %1252 = vmatpush2.bf16.msra.mxu0 0
  %1253 = vmatprep.subr.bf16.mxu0 0
  %1254 = vmatpush2.bf16.msra.mxu0 0
  %1255 = vmatprep.subr.bf16.mxu0 0
  %1256 = vmatpush2.bf16.msra.mxu0 0
  %1257 = vmatprep.mubr.bf16.mxu0 0
  %1258 = vmatmul.mubr.bf16.gmra.mxu0 %v1220
  %v1259 = vpop.f32.mrf.mxu0
  %v1260 = vadd.f32 0.0, %v1259
  %v1261 = vpop.f32.mrf.mxu0
  %v1262 = vpop.f32.mrf.mxu0
  %v1263 = vadd.f32 0.0, %v1262
  %v1264 = vpop.f32.mrf.mxu0
  %1265 = vmatprep.mubr.bf16.mxu0 0
  %1266 = vmatmul.mubr.bf16.gmra.mxu0 %v1223
  %v1267 = vpop.f32.mrf.mxu0
  %v1268 = vadd.f32 0.0, %v1267
  %v1269 = vpop.f32.mrf.mxu0
  %v1270 = vpop.f32.mrf.mxu0
  %v1271 = vpop.f32.mrf.mxu0
  %1272 = vdwg.mxu0
  %v1273 = vadd.f32 %v1131, %v1260
  %v1274 = vadd.f32 %v1134, %v1263
  %v1275 = vadd.f32 %v1139, %v1268
  %v1276 = vld [vmem:[%s5] sm:$0x1]
  %v1278 = vlaneseq
  %v1279 = vshrl.u32 %v1278, 7
  %v1280 = vsub.s32 0, %v1279
  %v1281 = vrot.slane %v1276, %v1280
  %v1283 = vmul.f32 %v1273, %v1281
  %v1284 = vmul.f32 %v1274, %v1281
  %v1285 = vmul.f32 %v1275, %v1281
  %v1286 = vld [vmem:[%s6] sm:$0x1]
  %v1288 = vlaneseq
  %v1289 = vshrl.u32 %v1288, 7
  %v1290 = vsub.s32 0, %v1289
  %v1291 = vrot.slane %v1286, %v1290
  %v1293 = vadd.f32 %v1283, %v1291
  %v1294 = vadd.f32 %v1284, %v1291
  %v1295 = vadd.f32 %v1285, %v1291
  %vm1296 = vcmp.gt.f32.partialorder %v1293, 0.0
  %vm1297 = vcmp.gt.f32.partialorder %v1294, 0.0
  %vm1298 = vcmp.gt.f32.partialorder %v1295, 0.0
  %v1299 = vmul.f32 %v1293, 0.01
  %v1300 = vmul.f32 %v1294, 0.01
  %v1301 = vmul.f32 %v1295, 0.01
  %v1302 = vsel %vm1296, %v1293, %v1299
  %v1303 = vsel %vm1297, %v1294, %v1300
  %v1304 = vsel %vm1298, %v1295, %v1301
  %v1308 = vcombine.high %v1302, %v1302
  %v1309 = vcombine.high %v1303, %v1303
  %v1310 = vcombine.high %v1304, %v1304
  %v1312 = vcombine.low %v1302, %v1308
  %v1313 = vcombine.low %v1309, %v1304
  %vm1316 = vcmask 785408
  %1317 = vst.msk [vmem:[%s7] sm:$0xff] %vm1316, %v1312
  %vm1318 = vcmask 781312
  %1319 = vst.msk [vmem:[%s7 + $0x8] sm:$0xf] %vm1318, %v1303
  %1320 = vst.msk [vmem:[%s7 + $0x10] sm:$0xff] %vm1316, %v1313
  %1321 = vst.msk [vmem:[%s7 + $0x18] sm:$0xf] %vm1318, %v1310
  %v1323 = vunpack.c.l.s4 1983009808
  %v1324 = vunpack.c.0.s8 %v1323
  %v1325 = vlaneseq
  %v1326 = vshrl.u32 %v1325, 7
  %v1327 = vsub.s32 %v1324, %v1326
  %v1328 = vrot.slane %v1302, %v1327
  %v1330 = vunpack.c.l.s4 1983009808
  %v1331 = vunpack.c.0.s8 %v1330
  %v1332 = vlaneseq
  %v1333 = vshrl.u32 %v1332, 7
  %v1334 = vsub.s32 %v1331, %v1333
  %v1335 = vrot.slane %v1308, %v1334
  %v1336 = vcombine.high %v1328, %v1328
  %v1337 = vcombine.high %v1335, %v1335
  %v1339 = vunpack.c.l.s4 1983009808
  %v1340 = vunpack.c.0.s8 %v1339
  %v1341 = vlaneseq
  %v1342 = vshrl.u32 %v1341, 7
  %v1343 = vsub.s32 %v1340, %v1342
  %v1344 = vrot.slane %v1303, %v1343
  %v1346 = vunpack.c.l.s4 1983009808
  %v1347 = vunpack.c.0.s8 %v1346
  %v1348 = vlaneseq
  %v1349 = vshrl.u32 %v1348, 7
  %v1350 = vsub.s32 %v1347, %v1349
  %v1351 = vrot.slane %v1309, %v1350
  %v1352 = vcombine.high %v1344, %v1344
  %v1353 = vcombine.high %v1351, %v1351
  %v1355 = vunpack.c.l.s4 1983009808
  %v1356 = vunpack.c.0.s8 %v1355
  %v1357 = vlaneseq
  %v1358 = vshrl.u32 %v1357, 7
  %v1359 = vsub.s32 %v1356, %v1358
  %v1360 = vrot.slane %v1304, %v1359
  %v1362 = vunpack.c.l.s4 1983009808
  %v1363 = vunpack.c.0.s8 %v1362
  %v1364 = vlaneseq
  %v1365 = vshrl.u32 %v1364, 7
  %v1366 = vsub.s32 %v1363, %v1365
  %v1367 = vrot.slane %v1310, %v1366
  %v1368 = vcombine.high %v1360, %v1360
  %v1369 = vcombine.high %v1367, %v1367
  %v1382 = vrot.slane %v1328, 7
  %v1383 = vrot.slane %v1382, 2
  %v1384 = vrot.slane %v1336, 7
  %v1385 = vrot.slane %v1384, 2
  %v1386 = vrot.slane %v1335, 7
  %v1387 = vrot.slane %v1386, 2
  %v1388 = vrot.slane %v1337, 7
  %v1389 = vrot.slane %v1388, 2
  %v1390 = vrot.slane %v1344, 7
  %v1391 = vrot.slane %v1390, 2
  %v1392 = vrot.slane %v1352, 7
  %v1393 = vrot.slane %v1392, 2
  %v1394 = vrot.slane %v1351, 7
  %v1395 = vrot.slane %v1394, 2
  %v1396 = vrot.slane %v1353, 7
  %v1397 = vrot.slane %v1396, 2
  %v1398 = vrot.slane %v1360, 7
  %v1399 = vrot.slane %v1398, 2
  %v1400 = vrot.slane %v1368, 7
  %v1401 = vrot.slane %v1400, 2
  %v1402 = vrot.slane %v1367, 7
  %v1403 = vrot.slane %v1402, 2
  %v1404 = vrot.slane %v1369, 7
  %v1405 = vrot.slane %v1404, 2
  %v1418 = vmax.f32 %v1328, %v1383
  %v1419 = vmax.f32 %v1336, %v1385
  %v1420 = vmax.f32 %v1335, %v1387
  %v1421 = vmax.f32 %v1337, %v1389
  %v1422 = vmax.f32 %v1344, %v1391
  %v1423 = vmax.f32 %v1352, %v1393
  %v1424 = vmax.f32 %v1351, %v1395
  %v1425 = vmax.f32 %v1353, %v1397
  %v1426 = vmax.f32 %v1360, %v1399
  %v1427 = vmax.f32 %v1368, %v1401
  %v1428 = vmax.f32 %v1367, %v1403
  %v1429 = vmax.f32 %v1369, %v1405
  %1442 = vrot.lane.b32.xlu0 %v1418, 112
  %v1443 = vpop.permute.xlu0 %1442
  %1444 = vrot.lane.b32.xlu0 %v1419, 112
  %v1445 = vpop.permute.xlu0 %1444
  %1446 = vrot.lane.b32.xlu0 %v1420, 112
  %v1447 = vpop.permute.xlu0 %1446
  %1448 = vrot.lane.b32.xlu0 %v1421, 112
  %v1449 = vpop.permute.xlu0 %1448
  %1450 = vrot.lane.b32.xlu0 %v1422, 112
  %v1451 = vpop.permute.xlu0 %1450
  %1452 = vrot.lane.b32.xlu0 %v1423, 112
  %v1453 = vpop.permute.xlu0 %1452
  %1454 = vrot.lane.b32.xlu0 %v1424, 112
  %v1455 = vpop.permute.xlu0 %1454
  %1456 = vrot.lane.b32.xlu0 %v1425, 112
  %v1457 = vpop.permute.xlu0 %1456
  %1458 = vrot.lane.b32.xlu0 %v1426, 112
  %v1459 = vpop.permute.xlu0 %1458
  %1460 = vrot.lane.b32.xlu0 %v1427, 112
  %v1461 = vpop.permute.xlu0 %1460
  %1462 = vrot.lane.b32.xlu0 %v1428, 112
  %v1463 = vpop.permute.xlu0 %1462
  %1464 = vrot.lane.b32.xlu0 %v1429, 112
  %v1465 = vpop.permute.xlu0 %1464
  %1466 = vrot.lane.b32.xlu0 %v1418, 96
  %v1467 = vpop.permute.xlu0 %1466
  %1468 = vrot.lane.b32.xlu0 %v1419, 96
  %v1469 = vpop.permute.xlu0 %1468
  %1470 = vrot.lane.b32.xlu0 %v1420, 96
  %v1471 = vpop.permute.xlu0 %1470
  %1472 = vrot.lane.b32.xlu0 %v1421, 96
  %v1473 = vpop.permute.xlu0 %1472
  %1474 = vrot.lane.b32.xlu0 %v1422, 96
  %v1475 = vpop.permute.xlu0 %1474
  %1476 = vrot.lane.b32.xlu0 %v1423, 96
  %v1477 = vpop.permute.xlu0 %1476
  %1478 = vrot.lane.b32.xlu0 %v1424, 96
  %v1479 = vpop.permute.xlu0 %1478
  %1480 = vrot.lane.b32.xlu0 %v1425, 96
  %v1481 = vpop.permute.xlu0 %1480
  %1482 = vrot.lane.b32.xlu0 %v1426, 96
  %v1483 = vpop.permute.xlu0 %1482
  %1484 = vrot.lane.b32.xlu0 %v1427, 96
  %v1485 = vpop.permute.xlu0 %1484
  %1486 = vrot.lane.b32.xlu0 %v1428, 96
  %v1487 = vpop.permute.xlu0 %1486
  %1488 = vrot.lane.b32.xlu0 %v1429, 96
  %v1489 = vpop.permute.xlu0 %1488
  %1490 = vrot.lane.b32.xlu0 %v1418, 80
  %v1491 = vpop.permute.xlu0 %1490
  %1492 = vrot.lane.b32.xlu0 %v1419, 80
  %v1493 = vpop.permute.xlu0 %1492
  %1494 = vrot.lane.b32.xlu0 %v1420, 80
  %v1495 = vpop.permute.xlu0 %1494
  %1496 = vrot.lane.b32.xlu0 %v1421, 80
  %v1497 = vpop.permute.xlu0 %1496
  %1498 = vrot.lane.b32.xlu0 %v1422, 80
  %v1499 = vpop.permute.xlu0 %1498
  %1500 = vrot.lane.b32.xlu0 %v1423, 80
  %v1501 = vpop.permute.xlu0 %1500
  %1502 = vrot.lane.b32.xlu0 %v1424, 80
  %v1503 = vpop.permute.xlu0 %1502
  %1504 = vrot.lane.b32.xlu0 %v1425, 80
  %v1505 = vpop.permute.xlu0 %1504
  %1506 = vrot.lane.b32.xlu0 %v1426, 80
  %v1507 = vpop.permute.xlu0 %1506
  %1508 = vrot.lane.b32.xlu0 %v1427, 80
  %v1509 = vpop.permute.xlu0 %1508
  %1510 = vrot.lane.b32.xlu0 %v1428, 80
  %v1511 = vpop.permute.xlu0 %1510
  %1512 = vrot.lane.b32.xlu0 %v1429, 80
  %v1513 = vpop.permute.xlu0 %1512
  %1514 = vrot.lane.b32.xlu0 %v1418, 64
  %v1515 = vpop.permute.xlu0 %1514
  %1516 = vrot.lane.b32.xlu0 %v1419, 64
  %v1517 = vpop.permute.xlu0 %1516
  %1518 = vrot.lane.b32.xlu0 %v1420, 64
  %v1519 = vpop.permute.xlu0 %1518
  %1520 = vrot.lane.b32.xlu0 %v1421, 64
  %v1521 = vpop.permute.xlu0 %1520
  %1522 = vrot.lane.b32.xlu0 %v1422, 64
  %v1523 = vpop.permute.xlu0 %1522
  %1524 = vrot.lane.b32.xlu0 %v1423, 64
  %v1525 = vpop.permute.xlu0 %1524
  %1526 = vrot.lane.b32.xlu0 %v1424, 64
  %v1527 = vpop.permute.xlu0 %1526
  %1528 = vrot.lane.b32.xlu0 %v1425, 64
  %v1529 = vpop.permute.xlu0 %1528
  %1530 = vrot.lane.b32.xlu0 %v1426, 64
  %v1531 = vpop.permute.xlu0 %1530
  %1532 = vrot.lane.b32.xlu0 %v1427, 64
  %v1533 = vpop.permute.xlu0 %1532
  %1534 = vrot.lane.b32.xlu0 %v1428, 64
  %v1535 = vpop.permute.xlu0 %1534
  %1536 = vrot.lane.b32.xlu0 %v1429, 64
  %v1537 = vpop.permute.xlu0 %1536
  %1538 = vrot.lane.b32.xlu0 %v1418, 48
  %v1539 = vpop.permute.xlu0 %1538
  %1540 = vrot.lane.b32.xlu0 %v1419, 48
  %v1541 = vpop.permute.xlu0 %1540
  %1542 = vrot.lane.b32.xlu0 %v1420, 48
  %v1543 = vpop.permute.xlu0 %1542
  %1544 = vrot.lane.b32.xlu0 %v1421, 48
  %v1545 = vpop.permute.xlu0 %1544
  %1546 = vrot.lane.b32.xlu0 %v1422, 48
  %v1547 = vpop.permute.xlu0 %1546
  %1548 = vrot.lane.b32.xlu0 %v1423, 48
  %v1549 = vpop.permute.xlu0 %1548
  %1550 = vrot.lane.b32.xlu0 %v1424, 48
  %v1551 = vpop.permute.xlu0 %1550
  %1552 = vrot.lane.b32.xlu0 %v1425, 48
  %v1553 = vpop.permute.xlu0 %1552
  %1554 = vrot.lane.b32.xlu0 %v1426, 48
  %v1555 = vpop.permute.xlu0 %1554
  %1556 = vrot.lane.b32.xlu0 %v1427, 48
  %v1557 = vpop.permute.xlu0 %1556
  %1558 = vrot.lane.b32.xlu0 %v1428, 48
  %v1559 = vpop.permute.xlu0 %1558
  %1560 = vrot.lane.b32.xlu0 %v1429, 48
  %v1561 = vpop.permute.xlu0 %1560
  %vm1562 = vcmask 1044484
  %v1563 = vsel %vm1562, %v1418, %v1418
  %vm1564 = vcmask 1046534
  %v1565 = vsel %vm1564, %v1418, %v1563
  %v1566 = vrot.slane %v1419, 7
  %vm1567 = vcmask 1041409
  %v1568 = vsel %vm1567, %v1566, %v1565
  %vm1569 = vcmask 1043459
  %v1570 = vsel %vm1569, %v1566, %v1568
  %vm1571 = vcmask 1045509
  %v1572 = vsel %vm1571, %v1566, %v1570
  %vm1573 = vcmask 1047559
  %v1574 = vsel %vm1573, %v1566, %v1572
  %v1575 = vsel %vm1562, %v1420, %v1420
  %v1576 = vsel %vm1564, %v1420, %v1575
  %v1577 = vrot.slane %v1421, 7
  %v1578 = vsel %vm1567, %v1577, %v1576
  %v1579 = vsel %vm1569, %v1577, %v1578
  %v1580 = vsel %vm1571, %v1577, %v1579
  %v1581 = vsel %vm1573, %v1577, %v1580
  %v1582 = vsel %vm1562, %v1422, %v1422
  %v1583 = vsel %vm1564, %v1422, %v1582
  %v1584 = vrot.slane %v1423, 7
  %v1585 = vsel %vm1567, %v1584, %v1583
  %v1586 = vsel %vm1569, %v1584, %v1585
  %v1587 = vsel %vm1571, %v1584, %v1586
  %v1588 = vsel %vm1573, %v1584, %v1587
  %v1589 = vsel %vm1562, %v1443, %v1443
  %v1590 = vsel %vm1564, %v1443, %v1589
  %v1591 = vrot.slane %v1445, 7
  %v1592 = vsel %vm1567, %v1591, %v1590
  %v1593 = vsel %vm1569, %v1591, %v1592
  %v1594 = vsel %vm1571, %v1591, %v1593
  %v1595 = vsel %vm1573, %v1591, %v1594
  %v1596 = vsel %vm1562, %v1447, %v1447
  %v1597 = vsel %vm1564, %v1447, %v1596
  %v1598 = vrot.slane %v1449, 7
  %v1599 = vsel %vm1567, %v1598, %v1597
  %v1600 = vsel %vm1569, %v1598, %v1599
  %v1601 = vsel %vm1571, %v1598, %v1600
  %v1602 = vsel %vm1573, %v1598, %v1601
  %v1603 = vsel %vm1562, %v1451, %v1451
  %v1604 = vsel %vm1564, %v1451, %v1603
  %v1605 = vrot.slane %v1453, 7
  %v1606 = vsel %vm1567, %v1605, %v1604
  %v1607 = vsel %vm1569, %v1605, %v1606
  %v1608 = vsel %vm1571, %v1605, %v1607
  %v1609 = vsel %vm1573, %v1605, %v1608
  %v1610 = vsel %vm1562, %v1467, %v1467
  %v1611 = vsel %vm1564, %v1467, %v1610
  %v1612 = vrot.slane %v1469, 7
  %v1613 = vsel %vm1567, %v1612, %v1611
  %v1614 = vsel %vm1569, %v1612, %v1613
  %v1615 = vsel %vm1571, %v1612, %v1614
  %v1616 = vsel %vm1573, %v1612, %v1615
  %v1617 = vsel %vm1562, %v1471, %v1471
  %v1618 = vsel %vm1564, %v1471, %v1617
  %v1619 = vrot.slane %v1473, 7
  %v1620 = vsel %vm1567, %v1619, %v1618
  %v1621 = vsel %vm1569, %v1619, %v1620
  %v1622 = vsel %vm1571, %v1619, %v1621
  %v1623 = vsel %vm1573, %v1619, %v1622
  %v1624 = vsel %vm1562, %v1475, %v1475
  %v1625 = vsel %vm1564, %v1475, %v1624
  %v1626 = vrot.slane %v1477, 7
  %v1627 = vsel %vm1567, %v1626, %v1625
  %v1628 = vsel %vm1569, %v1626, %v1627
  %v1629 = vsel %vm1571, %v1626, %v1628
  %v1630 = vsel %vm1573, %v1626, %v1629
  %v1631 = vsel %vm1562, %v1491, %v1491
  %v1632 = vsel %vm1564, %v1491, %v1631
  %v1633 = vrot.slane %v1493, 7
  %v1634 = vsel %vm1567, %v1633, %v1632
  %v1635 = vsel %vm1569, %v1633, %v1634
  %v1636 = vsel %vm1571, %v1633, %v1635
  %v1637 = vsel %vm1573, %v1633, %v1636
  %v1638 = vsel %vm1562, %v1495, %v1495
  %v1639 = vsel %vm1564, %v1495, %v1638
  %v1640 = vrot.slane %v1497, 7
  %v1641 = vsel %vm1567, %v1640, %v1639
  %v1642 = vsel %vm1569, %v1640, %v1641
  %v1643 = vsel %vm1571, %v1640, %v1642
  %v1644 = vsel %vm1573, %v1640, %v1643
  %v1645 = vsel %vm1562, %v1499, %v1499
  %v1646 = vsel %vm1564, %v1499, %v1645
  %v1647 = vrot.slane %v1501, 7
  %v1648 = vsel %vm1567, %v1647, %v1646
  %v1649 = vsel %vm1569, %v1647, %v1648
  %v1650 = vsel %vm1571, %v1647, %v1649
  %v1651 = vsel %vm1573, %v1647, %v1650
  %v1652 = vsel %vm1562, %v1515, %v1515
  %v1653 = vsel %vm1564, %v1515, %v1652
  %v1654 = vrot.slane %v1517, 7
  %v1655 = vsel %vm1567, %v1654, %v1653
  %v1656 = vsel %vm1569, %v1654, %v1655
  %v1657 = vsel %vm1571, %v1654, %v1656
  %v1658 = vsel %vm1573, %v1654, %v1657
  %v1659 = vsel %vm1562, %v1519, %v1519
  %v1660 = vsel %vm1564, %v1519, %v1659
  %v1661 = vrot.slane %v1521, 7
  %v1662 = vsel %vm1567, %v1661, %v1660
  %v1663 = vsel %vm1569, %v1661, %v1662
  %v1664 = vsel %vm1571, %v1661, %v1663
  %v1665 = vsel %vm1573, %v1661, %v1664
  %v1666 = vsel %vm1562, %v1523, %v1523
  %v1667 = vsel %vm1564, %v1523, %v1666
  %v1668 = vrot.slane %v1525, 7
  %v1669 = vsel %vm1567, %v1668, %v1667
  %v1670 = vsel %vm1569, %v1668, %v1669
  %v1671 = vsel %vm1571, %v1668, %v1670
  %v1672 = vsel %vm1573, %v1668, %v1671
  %v1673 = vsel %vm1562, %v1539, %v1539
  %v1674 = vsel %vm1564, %v1539, %v1673
  %v1675 = vrot.slane %v1541, 7
  %v1676 = vsel %vm1567, %v1675, %v1674
  %v1677 = vsel %vm1569, %v1675, %v1676
  %v1678 = vsel %vm1571, %v1675, %v1677
  %v1679 = vsel %vm1573, %v1675, %v1678
  %v1680 = vsel %vm1562, %v1543, %v1543
  %v1681 = vsel %vm1564, %v1543, %v1680
  %v1682 = vrot.slane %v1545, 7
  %v1683 = vsel %vm1567, %v1682, %v1681
  %v1684 = vsel %vm1569, %v1682, %v1683
  %v1685 = vsel %vm1571, %v1682, %v1684
  %v1686 = vsel %vm1573, %v1682, %v1685
  %v1687 = vsel %vm1562, %v1547, %v1547
  %v1688 = vsel %vm1564, %v1547, %v1687
  %v1689 = vrot.slane %v1549, 7
  %v1690 = vsel %vm1567, %v1689, %v1688
  %v1691 = vsel %vm1569, %v1689, %v1690
  %v1692 = vsel %vm1571, %v1689, %v1691
  %v1693 = vsel %vm1573, %v1689, %v1692
  %v1694 = vsel %vm1562, %v1424, %v1424
  %v1695 = vsel %vm1564, %v1424, %v1694
  %v1696 = vrot.slane %v1425, 7
  %v1697 = vsel %vm1567, %v1696, %v1695
  %v1698 = vsel %vm1569, %v1696, %v1697
  %v1699 = vsel %vm1571, %v1696, %v1698
  %v1700 = vsel %vm1573, %v1696, %v1699
  %v1701 = vsel %vm1562, %v1426, %v1426
  %v1702 = vsel %vm1564, %v1426, %v1701
  %v1703 = vrot.slane %v1427, 7
  %v1704 = vsel %vm1567, %v1703, %v1702
  %v1705 = vsel %vm1569, %v1703, %v1704
  %v1706 = vsel %vm1571, %v1703, %v1705
  %v1707 = vsel %vm1573, %v1703, %v1706
  %v1708 = vsel %vm1562, %v1428, %v1428
  %v1709 = vsel %vm1564, %v1428, %v1708
  %v1710 = vrot.slane %v1429, 7
  %v1711 = vsel %vm1567, %v1710, %v1709
  %v1712 = vsel %vm1569, %v1710, %v1711
  %v1713 = vsel %vm1571, %v1710, %v1712
  %v1714 = vsel %vm1573, %v1710, %v1713
  %v1715 = vsel %vm1562, %v1455, %v1455
  %v1716 = vsel %vm1564, %v1455, %v1715
  %v1717 = vrot.slane %v1457, 7
  %v1718 = vsel %vm1567, %v1717, %v1716
  %v1719 = vsel %vm1569, %v1717, %v1718
  %v1720 = vsel %vm1571, %v1717, %v1719
  %v1721 = vsel %vm1573, %v1717, %v1720
  %v1722 = vsel %vm1562, %v1459, %v1459
  %v1723 = vsel %vm1564, %v1459, %v1722
  %v1724 = vrot.slane %v1461, 7
  %v1725 = vsel %vm1567, %v1724, %v1723
  %v1726 = vsel %vm1569, %v1724, %v1725
  %v1727 = vsel %vm1571, %v1724, %v1726
  %v1728 = vsel %vm1573, %v1724, %v1727
  %v1729 = vsel %vm1562, %v1463, %v1463
  %v1730 = vsel %vm1564, %v1463, %v1729
  %v1731 = vrot.slane %v1465, 7
  %v1732 = vsel %vm1567, %v1731, %v1730
  %v1733 = vsel %vm1569, %v1731, %v1732
  %v1734 = vsel %vm1571, %v1731, %v1733
  %v1735 = vsel %vm1573, %v1731, %v1734
  %v1736 = vsel %vm1562, %v1479, %v1479
  %v1737 = vsel %vm1564, %v1479, %v1736
  %v1738 = vrot.slane %v1481, 7
  %v1739 = vsel %vm1567, %v1738, %v1737
  %v1740 = vsel %vm1569, %v1738, %v1739
  %v1741 = vsel %vm1571, %v1738, %v1740
  %v1742 = vsel %vm1573, %v1738, %v1741
  %v1743 = vsel %vm1562, %v1483, %v1483
  %v1744 = vsel %vm1564, %v1483, %v1743
  %v1745 = vrot.slane %v1485, 7
  %v1746 = vsel %vm1567, %v1745, %v1744
  %v1747 = vsel %vm1569, %v1745, %v1746
  %v1748 = vsel %vm1571, %v1745, %v1747
  %v1749 = vsel %vm1573, %v1745, %v1748
  %v1750 = vsel %vm1562, %v1487, %v1487
  %v1751 = vsel %vm1564, %v1487, %v1750
  %v1752 = vrot.slane %v1489, 7
  %v1753 = vsel %vm1567, %v1752, %v1751
  %v1754 = vsel %vm1569, %v1752, %v1753
  %v1755 = vsel %vm1571, %v1752, %v1754
  %v1756 = vsel %vm1573, %v1752, %v1755
  %v1757 = vsel %vm1562, %v1503, %v1503
  %v1758 = vsel %vm1564, %v1503, %v1757
  %v1759 = vrot.slane %v1505, 7
  %v1760 = vsel %vm1567, %v1759, %v1758
  %v1761 = vsel %vm1569, %v1759, %v1760
  %v1762 = vsel %vm1571, %v1759, %v1761
  %v1763 = vsel %vm1573, %v1759, %v1762
  %v1764 = vsel %vm1562, %v1507, %v1507
  %v1765 = vsel %vm1564, %v1507, %v1764
  %v1766 = vrot.slane %v1509, 7
  %v1767 = vsel %vm1567, %v1766, %v1765
  %v1768 = vsel %vm1569, %v1766, %v1767
  %v1769 = vsel %vm1571, %v1766, %v1768
  %v1770 = vsel %vm1573, %v1766, %v1769
  %v1771 = vsel %vm1562, %v1511, %v1511
  %v1772 = vsel %vm1564, %v1511, %v1771
  %v1773 = vrot.slane %v1513, 7
  %v1774 = vsel %vm1567, %v1773, %v1772
  %v1775 = vsel %vm1569, %v1773, %v1774
  %v1776 = vsel %vm1571, %v1773, %v1775
  %v1777 = vsel %vm1573, %v1773, %v1776
  %v1778 = vsel %vm1562, %v1527, %v1527
  %v1779 = vsel %vm1564, %v1527, %v1778
  %v1780 = vrot.slane %v1529, 7
  %v1781 = vsel %vm1567, %v1780, %v1779
  %v1782 = vsel %vm1569, %v1780, %v1781
  %v1783 = vsel %vm1571, %v1780, %v1782
  %v1784 = vsel %vm1573, %v1780, %v1783
  %v1785 = vsel %vm1562, %v1531, %v1531
  %v1786 = vsel %vm1564, %v1531, %v1785
  %v1787 = vrot.slane %v1533, 7
  %v1788 = vsel %vm1567, %v1787, %v1786
  %v1789 = vsel %vm1569, %v1787, %v1788
  %v1790 = vsel %vm1571, %v1787, %v1789
  %v1791 = vsel %vm1573, %v1787, %v1790
  %v1792 = vsel %vm1562, %v1535, %v1535
  %v1793 = vsel %vm1564, %v1535, %v1792
  %v1794 = vrot.slane %v1537, 7
  %v1795 = vsel %vm1567, %v1794, %v1793
  %v1796 = vsel %vm1569, %v1794, %v1795
  %v1797 = vsel %vm1571, %v1794, %v1796
  %v1798 = vsel %vm1573, %v1794, %v1797
  %v1799 = vsel %vm1562, %v1551, %v1551
  %v1800 = vsel %vm1564, %v1551, %v1799
  %v1801 = vrot.slane %v1553, 7
  %v1802 = vsel %vm1567, %v1801, %v1800
  %v1803 = vsel %vm1569, %v1801, %v1802
  %v1804 = vsel %vm1571, %v1801, %v1803
  %v1805 = vsel %vm1573, %v1801, %v1804
  %v1806 = vsel %vm1562, %v1555, %v1555
  %v1807 = vsel %vm1564, %v1555, %v1806
  %v1808 = vrot.slane %v1557, 7
  %v1809 = vsel %vm1567, %v1808, %v1807
  %v1810 = vsel %vm1569, %v1808, %v1809
  %v1811 = vsel %vm1571, %v1808, %v1810
  %v1812 = vsel %vm1573, %v1808, %v1811
  %v1813 = vsel %vm1562, %v1559, %v1559
  %v1814 = vsel %vm1564, %v1559, %v1813
  %v1815 = vrot.slane %v1561, 7
  %v1816 = vsel %vm1567, %v1815, %v1814
  %v1817 = vsel %vm1569, %v1815, %v1816
  %v1818 = vsel %vm1571, %v1815, %v1817
  %v1819 = vsel %vm1573, %v1815, %v1818
  %v1856 = vcombine.low %v1574, %v1595
  %v1858 = vunpack.c.l.s4 1934713408
  %v1859 = vunpack.c.0.s8 %v1858
  %v1860 = vlaneseq
  %v1861 = vshrl.u32 %v1860, 7
  %v1862 = vsub.s32 %v1859, %v1861
  %v1863 = vrot.slane %v1856, %v1862
  %v1864 = vcombine.high %v1863, 0.0
  %v1865 = vcombine.low %v1616, %v1637
  %v1867 = vunpack.c.l.s4 1934713408
  %v1868 = vunpack.c.0.s8 %v1867
  %v1869 = vlaneseq
  %v1870 = vshrl.u32 %v1869, 7
  %v1871 = vsub.s32 %v1868, %v1870
  %v1872 = vrot.slane %v1865, %v1871
  %v1873 = vcombine.high %v1872, 0.0
  %v1874 = vcombine.low %v1658, %v1679
  %v1876 = vunpack.c.l.s4 1934713408
  %v1877 = vunpack.c.0.s8 %v1876
  %v1878 = vlaneseq
  %v1879 = vshrl.u32 %v1878, 7
  %v1880 = vsub.s32 %v1877, %v1879
  %v1881 = vrot.slane %v1874, %v1880
  %v1882 = vcombine.high %v1881, 0.0
  %v1883 = vcombine.low %v1581, %v1602
  %v1885 = vunpack.c.l.s4 1934713408
  %v1886 = vunpack.c.0.s8 %v1885
  %v1887 = vlaneseq
  %v1888 = vshrl.u32 %v1887, 7
  %v1889 = vsub.s32 %v1886, %v1888
  %v1890 = vrot.slane %v1883, %v1889
  %v1891 = vcombine.high %v1890, 0.0
  %v1892 = vcombine.low %v1623, %v1644
  %v1894 = vunpack.c.l.s4 1934713408
  %v1895 = vunpack.c.0.s8 %v1894
  %v1896 = vlaneseq
  %v1897 = vshrl.u32 %v1896, 7
  %v1898 = vsub.s32 %v1895, %v1897
  %v1899 = vrot.slane %v1892, %v1898
  %v1900 = vcombine.high %v1899, 0.0
  %v1901 = vcombine.low %v1665, %v1686
  %v1903 = vunpack.c.l.s4 1934713408
  %v1904 = vunpack.c.0.s8 %v1903
  %v1905 = vlaneseq
  %v1906 = vshrl.u32 %v1905, 7
  %v1907 = vsub.s32 %v1904, %v1906
  %v1908 = vrot.slane %v1901, %v1907
  %v1909 = vcombine.high %v1908, 0.0
  %v1910 = vcombine.low %v1588, %v1609
  %v1912 = vunpack.c.l.s4 1934713408
  %v1913 = vunpack.c.0.s8 %v1912
  %v1914 = vlaneseq
  %v1915 = vshrl.u32 %v1914, 7
  %v1916 = vsub.s32 %v1913, %v1915
  %v1917 = vrot.slane %v1910, %v1916
  %v1918 = vcombine.high %v1917, 0.0
  %v1919 = vcombine.low %v1630, %v1651
  %v1921 = vunpack.c.l.s4 1934713408
  %v1922 = vunpack.c.0.s8 %v1921
  %v1923 = vlaneseq
  %v1924 = vshrl.u32 %v1923, 7
  %v1925 = vsub.s32 %v1922, %v1924
  %v1926 = vrot.slane %v1919, %v1925
  %v1927 = vcombine.high %v1926, 0.0
  %v1928 = vcombine.low %v1672, %v1693
  %v1930 = vunpack.c.l.s4 1934713408
  %v1931 = vunpack.c.0.s8 %v1930
  %v1932 = vlaneseq
  %v1933 = vshrl.u32 %v1932, 7
  %v1934 = vsub.s32 %v1931, %v1933
  %v1935 = vrot.slane %v1928, %v1934
  %v1936 = vcombine.high %v1935, 0.0
  %v1937 = vcombine.low %v1700, %v1721
  %v1939 = vunpack.c.l.s4 1934713408
  %v1940 = vunpack.c.0.s8 %v1939
  %v1941 = vlaneseq
  %v1942 = vshrl.u32 %v1941, 7
  %v1943 = vsub.s32 %v1940, %v1942
  %v1944 = vrot.slane %v1937, %v1943
  %v1945 = vcombine.high %v1944, 0.0
  %v1946 = vcombine.low %v1742, %v1763
  %v1948 = vunpack.c.l.s4 1934713408
  %v1949 = vunpack.c.0.s8 %v1948
  %v1950 = vlaneseq
  %v1951 = vshrl.u32 %v1950, 7
  %v1952 = vsub.s32 %v1949, %v1951
  %v1953 = vrot.slane %v1946, %v1952
  %v1954 = vcombine.high %v1953, 0.0
  %v1955 = vcombine.low %v1784, %v1805
  %v1957 = vunpack.c.l.s4 1934713408
  %v1958 = vunpack.c.0.s8 %v1957
  %v1959 = vlaneseq
  %v1960 = vshrl.u32 %v1959, 7
  %v1961 = vsub.s32 %v1958, %v1960
  %v1962 = vrot.slane %v1955, %v1961
  %v1963 = vcombine.high %v1962, 0.0
  %v1964 = vcombine.low %v1707, %v1728
  %v1966 = vunpack.c.l.s4 1934713408
  %v1967 = vunpack.c.0.s8 %v1966
  %v1968 = vlaneseq
  %v1969 = vshrl.u32 %v1968, 7
  %v1970 = vsub.s32 %v1967, %v1969
  %v1971 = vrot.slane %v1964, %v1970
  %v1972 = vcombine.high %v1971, 0.0
  %v1973 = vcombine.low %v1749, %v1770
  %v1975 = vunpack.c.l.s4 1934713408
  %v1976 = vunpack.c.0.s8 %v1975
  %v1977 = vlaneseq
  %v1978 = vshrl.u32 %v1977, 7
  %v1979 = vsub.s32 %v1976, %v1978
  %v1980 = vrot.slane %v1973, %v1979
  %v1981 = vcombine.high %v1980, 0.0
  %v1982 = vcombine.low %v1791, %v1812
  %v1984 = vunpack.c.l.s4 1934713408
  %v1985 = vunpack.c.0.s8 %v1984
  %v1986 = vlaneseq
  %v1987 = vshrl.u32 %v1986, 7
  %v1988 = vsub.s32 %v1985, %v1987
  %v1989 = vrot.slane %v1982, %v1988
  %v1990 = vcombine.high %v1989, 0.0
  %v1991 = vcombine.low %v1714, %v1735
  %v1993 = vunpack.c.l.s4 1934713408
  %v1994 = vunpack.c.0.s8 %v1993
  %v1995 = vlaneseq
  %v1996 = vshrl.u32 %v1995, 7
  %v1997 = vsub.s32 %v1994, %v1996
  %v1998 = vrot.slane %v1991, %v1997
  %v1999 = vcombine.high %v1998, 0.0
  %v2000 = vcombine.low %v1756, %v1777
  %v2002 = vunpack.c.l.s4 1934713408
  %v2003 = vunpack.c.0.s8 %v2002
  %v2004 = vlaneseq
  %v2005 = vshrl.u32 %v2004, 7
  %v2006 = vsub.s32 %v2003, %v2005
  %v2007 = vrot.slane %v2000, %v2006
  %v2008 = vcombine.high %v2007, 0.0
  %v2009 = vcombine.low %v1798, %v1819
  %v2011 = vunpack.c.l.s4 1934713408
  %v2012 = vunpack.c.0.s8 %v2011
  %v2013 = vlaneseq
  %v2014 = vshrl.u32 %v2013, 7
  %v2015 = vsub.s32 %v2012, %v2014
  %v2016 = vrot.slane %v2009, %v2015
  %v2017 = vcombine.high %v2016, 0.0
  %2054 = vrot.lane.b32.xlu0 %v1863, 120
  %v2055 = vpop.permute.xlu0 %2054
  %2056 = vrot.lane.b32.xlu0 %v1872, 120
  %v2057 = vpop.permute.xlu0 %2056
  %2058 = vrot.lane.b32.xlu0 %v1881, 120
  %v2059 = vpop.permute.xlu0 %2058
  %2060 = vrot.lane.b32.xlu0 %v1864, 120
  %v2061 = vpop.permute.xlu0 %2060
  %2062 = vrot.lane.b32.xlu0 %v1873, 120
  %v2063 = vpop.permute.xlu0 %2062
  %2064 = vrot.lane.b32.xlu0 %v1882, 120
  %v2065 = vpop.permute.xlu0 %2064
  %2066 = vrot.lane.b32.xlu0 %v1890, 120
  %v2067 = vpop.permute.xlu0 %2066
  %2068 = vrot.lane.b32.xlu0 %v1899, 120
  %v2069 = vpop.permute.xlu0 %2068
  %2070 = vrot.lane.b32.xlu0 %v1908, 120
  %v2071 = vpop.permute.xlu0 %2070
  %2072 = vrot.lane.b32.xlu0 %v1891, 120
  %v2073 = vpop.permute.xlu0 %2072
  %2074 = vrot.lane.b32.xlu0 %v1900, 120
  %v2075 = vpop.permute.xlu0 %2074
  %2076 = vrot.lane.b32.xlu0 %v1909, 120
  %v2077 = vpop.permute.xlu0 %2076
  %2078 = vrot.lane.b32.xlu0 %v1917, 120
  %v2079 = vpop.permute.xlu0 %2078
  %2080 = vrot.lane.b32.xlu0 %v1926, 120
  %v2081 = vpop.permute.xlu0 %2080
  %2082 = vrot.lane.b32.xlu0 %v1935, 120
  %v2083 = vpop.permute.xlu0 %2082
  %2084 = vrot.lane.b32.xlu0 %v1918, 120
  %v2085 = vpop.permute.xlu0 %2084
  %2086 = vrot.lane.b32.xlu0 %v1927, 120
  %v2087 = vpop.permute.xlu0 %2086
  %2088 = vrot.lane.b32.xlu0 %v1936, 120
  %v2089 = vpop.permute.xlu0 %2088
  %2090 = vrot.lane.b32.xlu0 %v1944, 120
  %v2091 = vpop.permute.xlu0 %2090
  %2092 = vrot.lane.b32.xlu0 %v1953, 120
  %v2093 = vpop.permute.xlu0 %2092
  %2094 = vrot.lane.b32.xlu0 %v1962, 120
  %v2095 = vpop.permute.xlu0 %2094
  %2096 = vrot.lane.b32.xlu0 %v1945, 120
  %v2097 = vpop.permute.xlu0 %2096
  %2098 = vrot.lane.b32.xlu0 %v1954, 120
  %v2099 = vpop.permute.xlu0 %2098
  %2100 = vrot.lane.b32.xlu0 %v1963, 120
  %v2101 = vpop.permute.xlu0 %2100
  %2102 = vrot.lane.b32.xlu0 %v1971, 120
  %v2103 = vpop.permute.xlu0 %2102
  %2104 = vrot.lane.b32.xlu0 %v1980, 120
  %v2105 = vpop.permute.xlu0 %2104
  %2106 = vrot.lane.b32.xlu0 %v1989, 120
  %v2107 = vpop.permute.xlu0 %2106
  %2108 = vrot.lane.b32.xlu0 %v1972, 120
  %v2109 = vpop.permute.xlu0 %2108
  %2110 = vrot.lane.b32.xlu0 %v1981, 120
  %v2111 = vpop.permute.xlu0 %2110
  %2112 = vrot.lane.b32.xlu0 %v1990, 120
  %v2113 = vpop.permute.xlu0 %2112
  %2114 = vrot.lane.b32.xlu0 %v1998, 120
  %v2115 = vpop.permute.xlu0 %2114
  %2116 = vrot.lane.b32.xlu0 %v2007, 120
  %v2117 = vpop.permute.xlu0 %2116
  %2118 = vrot.lane.b32.xlu0 %v2016, 120
  %v2119 = vpop.permute.xlu0 %2118
  %2120 = vrot.lane.b32.xlu0 %v1999, 120
  %v2121 = vpop.permute.xlu0 %2120
  %2122 = vrot.lane.b32.xlu0 %v2008, 120
  %v2123 = vpop.permute.xlu0 %2122
  %2124 = vrot.lane.b32.xlu0 %v2017, 120
  %v2125 = vpop.permute.xlu0 %2124
  %v2162 = vmax.f32 %v1863, %v2055
  %v2163 = vmax.f32 %v1872, %v2057
  %v2164 = vmax.f32 %v1881, %v2059
  %v2165 = vmax.f32 %v1864, %v2061
  %v2166 = vmax.f32 %v1873, %v2063
  %v2167 = vmax.f32 %v1882, %v2065
  %v2168 = vmax.f32 %v1890, %v2067
  %v2169 = vmax.f32 %v1899, %v2069
  %v2170 = vmax.f32 %v1908, %v2071
  %v2171 = vmax.f32 %v1891, %v2073
  %v2172 = vmax.f32 %v1900, %v2075
  %v2173 = vmax.f32 %v1909, %v2077
  %v2174 = vmax.f32 %v1917, %v2079
  %v2175 = vmax.f32 %v1926, %v2081
  %v2176 = vmax.f32 %v1935, %v2083
  %v2177 = vmax.f32 %v1918, %v2085
  %v2178 = vmax.f32 %v1927, %v2087
  %v2179 = vmax.f32 %v1936, %v2089
  %v2180 = vmax.f32 %v1944, %v2091
  %v2181 = vmax.f32 %v1953, %v2093
  %v2182 = vmax.f32 %v1962, %v2095
  %v2183 = vmax.f32 %v1945, %v2097
  %v2184 = vmax.f32 %v1954, %v2099
  %v2185 = vmax.f32 %v1963, %v2101
  %v2186 = vmax.f32 %v1971, %v2103
  %v2187 = vmax.f32 %v1980, %v2105
  %v2188 = vmax.f32 %v1989, %v2107
  %v2189 = vmax.f32 %v1972, %v2109
  %v2190 = vmax.f32 %v1981, %v2111
  %v2191 = vmax.f32 %v1990, %v2113
  %v2192 = vmax.f32 %v1998, %v2115
  %v2193 = vmax.f32 %v2007, %v2117
  %v2194 = vmax.f32 %v2016, %v2119
  %v2195 = vmax.f32 %v1999, %v2121
  %v2196 = vmax.f32 %v2008, %v2123
  %v2197 = vmax.f32 %v2017, %v2125
  %v2198 = vcombine.low %v2162, %v2165
  %v2200 = vunpack.c.l.s4 1934713408
  %v2201 = vunpack.c.0.s8 %v2200
  %v2202 = vlaneseq
  %v2203 = vshrl.u32 %v2202, 7
  %v2204 = vsub.s32 %v2201, %v2203
  %v2205 = vrot.slane %v2198, %v2204
  %v2206 = vcombine.high %v2205, 0.0
  %v2207 = vcombine.low %v2168, %v2171
  %v2209 = vunpack.c.l.s4 1934713408
  %v2210 = vunpack.c.0.s8 %v2209
  %v2211 = vlaneseq
  %v2212 = vshrl.u32 %v2211, 7
  %v2213 = vsub.s32 %v2210, %v2212
  %v2214 = vrot.slane %v2207, %v2213
  %v2215 = vcombine.high %v2214, 0.0
  %v2216 = vcombine.low %v2174, %v2177
  %v2218 = vunpack.c.l.s4 1934713408
  %v2219 = vunpack.c.0.s8 %v2218
  %v2220 = vlaneseq
  %v2221 = vshrl.u32 %v2220, 7
  %v2222 = vsub.s32 %v2219, %v2221
  %v2223 = vrot.slane %v2216, %v2222
  %v2224 = vcombine.high %v2223, 0.0
  %v2225 = vcombine.low %v2163, %v2166
  %v2227 = vunpack.c.l.s4 1934713408
  %v2228 = vunpack.c.0.s8 %v2227
  %v2229 = vlaneseq
  %v2230 = vshrl.u32 %v2229, 7
  %v2231 = vsub.s32 %v2228, %v2230
  %v2232 = vrot.slane %v2225, %v2231
  %v2233 = vcombine.high %v2232, 0.0
  %v2234 = vcombine.low %v2169, %v2172
  %v2236 = vunpack.c.l.s4 1934713408
  %v2237 = vunpack.c.0.s8 %v2236
  %v2238 = vlaneseq
  %v2239 = vshrl.u32 %v2238, 7
  %v2240 = vsub.s32 %v2237, %v2239
  %v2241 = vrot.slane %v2234, %v2240
  %v2242 = vcombine.high %v2241, 0.0
  %v2243 = vcombine.low %v2175, %v2178
  %v2245 = vunpack.c.l.s4 1934713408
  %v2246 = vunpack.c.0.s8 %v2245
  %v2247 = vlaneseq
  %v2248 = vshrl.u32 %v2247, 7
  %v2249 = vsub.s32 %v2246, %v2248
  %v2250 = vrot.slane %v2243, %v2249
  %v2251 = vcombine.high %v2250, 0.0
  %v2252 = vcombine.low %v2164, %v2167
  %v2254 = vunpack.c.l.s4 1934713408
  %v2255 = vunpack.c.0.s8 %v2254
  %v2256 = vlaneseq
  %v2257 = vshrl.u32 %v2256, 7
  %v2258 = vsub.s32 %v2255, %v2257
  %v2259 = vrot.slane %v2252, %v2258
  %v2260 = vcombine.high %v2259, 0.0
  %v2261 = vcombine.low %v2170, %v2173
  %v2263 = vunpack.c.l.s4 1934713408
  %v2264 = vunpack.c.0.s8 %v2263
  %v2265 = vlaneseq
  %v2266 = vshrl.u32 %v2265, 7
  %v2267 = vsub.s32 %v2264, %v2266
  %v2268 = vrot.slane %v2261, %v2267
  %v2269 = vcombine.high %v2268, 0.0
  %v2270 = vcombine.low %v2176, %v2179
  %v2272 = vunpack.c.l.s4 1934713408
  %v2273 = vunpack.c.0.s8 %v2272
  %v2274 = vlaneseq
  %v2275 = vshrl.u32 %v2274, 7
  %v2276 = vsub.s32 %v2273, %v2275
  %v2277 = vrot.slane %v2270, %v2276
  %v2278 = vcombine.high %v2277, 0.0
  %v2279 = vcombine.low %v2180, %v2183
  %v2281 = vunpack.c.l.s4 1934713408
  %v2282 = vunpack.c.0.s8 %v2281
  %v2283 = vlaneseq
  %v2284 = vshrl.u32 %v2283, 7
  %v2285 = vsub.s32 %v2282, %v2284
  %v2286 = vrot.slane %v2279, %v2285
  %v2287 = vcombine.high %v2286, 0.0
  %v2288 = vcombine.low %v2186, %v2189
  %v2290 = vunpack.c.l.s4 1934713408
  %v2291 = vunpack.c.0.s8 %v2290
  %v2292 = vlaneseq
  %v2293 = vshrl.u32 %v2292, 7
  %v2294 = vsub.s32 %v2291, %v2293
  %v2295 = vrot.slane %v2288, %v2294
  %v2296 = vcombine.high %v2295, 0.0
  %v2297 = vcombine.low %v2192, %v2195
  %v2299 = vunpack.c.l.s4 1934713408
  %v2300 = vunpack.c.0.s8 %v2299
  %v2301 = vlaneseq
  %v2302 = vshrl.u32 %v2301, 7
  %v2303 = vsub.s32 %v2300, %v2302
  %v2304 = vrot.slane %v2297, %v2303
  %v2305 = vcombine.high %v2304, 0.0
  %v2306 = vcombine.low %v2181, %v2184
  %v2308 = vunpack.c.l.s4 1934713408
  %v2309 = vunpack.c.0.s8 %v2308
  %v2310 = vlaneseq
  %v2311 = vshrl.u32 %v2310, 7
  %v2312 = vsub.s32 %v2309, %v2311
  %v2313 = vrot.slane %v2306, %v2312
  %v2314 = vcombine.high %v2313, 0.0
  %v2315 = vcombine.low %v2187, %v2190
  %v2317 = vunpack.c.l.s4 1934713408
  %v2318 = vunpack.c.0.s8 %v2317
  %v2319 = vlaneseq
  %v2320 = vshrl.u32 %v2319, 7
  %v2321 = vsub.s32 %v2318, %v2320
  %v2322 = vrot.slane %v2315, %v2321
  %v2323 = vcombine.high %v2322, 0.0
  %v2324 = vcombine.low %v2193, %v2196
  %v2326 = vunpack.c.l.s4 1934713408
  %v2327 = vunpack.c.0.s8 %v2326
  %v2328 = vlaneseq
  %v2329 = vshrl.u32 %v2328, 7
  %v2330 = vsub.s32 %v2327, %v2329
  %v2331 = vrot.slane %v2324, %v2330
  %v2332 = vcombine.high %v2331, 0.0
  %v2333 = vcombine.low %v2182, %v2185
  %v2335 = vunpack.c.l.s4 1934713408
  %v2336 = vunpack.c.0.s8 %v2335
  %v2337 = vlaneseq
  %v2338 = vshrl.u32 %v2337, 7
  %v2339 = vsub.s32 %v2336, %v2338
  %v2340 = vrot.slane %v2333, %v2339
  %v2341 = vcombine.high %v2340, 0.0
  %v2342 = vcombine.low %v2188, %v2191
  %v2344 = vunpack.c.l.s4 1934713408
  %v2345 = vunpack.c.0.s8 %v2344
  %v2346 = vlaneseq
  %v2347 = vshrl.u32 %v2346, 7
  %v2348 = vsub.s32 %v2345, %v2347
  %v2349 = vrot.slane %v2342, %v2348
  %v2350 = vcombine.high %v2349, 0.0
  %v2351 = vcombine.low %v2194, %v2197
  %v2353 = vunpack.c.l.s4 1934713408
  %v2354 = vunpack.c.0.s8 %v2353
  %v2355 = vlaneseq
  %v2356 = vshrl.u32 %v2355, 7
  %v2357 = vsub.s32 %v2354, %v2356
  %v2358 = vrot.slane %v2351, %v2357
  %v2359 = vcombine.high %v2358, 0.0
  %v2366 = vcombine.low %v2205, %v2214
  %v2368 = vunpack.c.l.s4 1983009808
  %v2369 = vunpack.c.0.s8 %v2368
  %v2370 = vlaneseq
  %v2371 = vshrl.u32 %v2370, 7
  %v2372 = vsub.s32 %v2369, %v2371
  %v2373 = vrot.slane %v2366, %v2372
  %v2375 = vunpack.c.l.s4 1983009808
  %v2376 = vunpack.c.0.s8 %v2375
  %v2377 = vlaneseq
  %v2378 = vshrl.u32 %v2377, 7
  %v2379 = vsub.s32 %v2376, %v2378
  %v2380 = vrot.slane %v2223, %v2379
  %v2381 = vcombine.low %v2373, %v2380
  %v2382 = vcombine.low %v2286, %v2295
  %v2384 = vunpack.c.l.s4 1983009808
  %v2385 = vunpack.c.0.s8 %v2384
  %v2386 = vlaneseq
  %v2387 = vshrl.u32 %v2386, 7
  %v2388 = vsub.s32 %v2385, %v2387
  %v2389 = vrot.slane %v2382, %v2388
  %v2391 = vunpack.c.l.s4 1983009808
  %v2392 = vunpack.c.0.s8 %v2391
  %v2393 = vlaneseq
  %v2394 = vshrl.u32 %v2393, 7
  %v2395 = vsub.s32 %v2392, %v2394
  %v2396 = vrot.slane %v2304, %v2395
  %v2397 = vcombine.low %v2389, %v2396
  %v2406 = vcombine.low %v2206, %v2215
  %v2408 = vunpack.c.l.s4 1983009808
  %v2409 = vunpack.c.0.s8 %v2408
  %v2410 = vlaneseq
  %v2411 = vshrl.u32 %v2410, 7
  %v2412 = vsub.s32 %v2409, %v2411
  %v2413 = vrot.slane %v2406, %v2412
  %v2415 = vunpack.c.l.s4 1983009808
  %v2416 = vunpack.c.0.s8 %v2415
  %v2417 = vlaneseq
  %v2418 = vshrl.u32 %v2417, 7
  %v2419 = vsub.s32 %v2416, %v2418
  %v2420 = vrot.slane %v2224, %v2419
  %v2421 = vcombine.low %v2413, %v2420
  %v2422 = vcombine.low %v2287, %v2296
  %v2424 = vunpack.c.l.s4 1983009808
  %v2425 = vunpack.c.0.s8 %v2424
  %v2426 = vlaneseq
  %v2427 = vshrl.u32 %v2426, 7
  %v2428 = vsub.s32 %v2425, %v2427
  %v2429 = vrot.slane %v2422, %v2428
  %v2431 = vunpack.c.l.s4 1983009808
  %v2432 = vunpack.c.0.s8 %v2431
  %v2433 = vlaneseq
  %v2434 = vshrl.u32 %v2433, 7
  %v2435 = vsub.s32 %v2432, %v2434
  %v2436 = vrot.slane %v2305, %v2435
  %v2437 = vcombine.low %v2429, %v2436
  %2438 = vrot.lane.b32.xlu0 %v2421, 8
  %v2439 = vpop.permute.xlu0 %2438
  %2440 = vrot.lane.b32.xlu0 %v2437, 8
  %v2441 = vpop.permute.xlu0 %2440
  %v2450 = vcombine.low %v2232, %v2241
  %v2452 = vunpack.c.l.s4 1983009808
  %v2453 = vunpack.c.0.s8 %v2452
  %v2454 = vlaneseq
  %v2455 = vshrl.u32 %v2454, 7
  %v2456 = vsub.s32 %v2453, %v2455
  %v2457 = vrot.slane %v2450, %v2456
  %v2459 = vunpack.c.l.s4 1983009808
  %v2460 = vunpack.c.0.s8 %v2459
  %v2461 = vlaneseq
  %v2462 = vshrl.u32 %v2461, 7
  %v2463 = vsub.s32 %v2460, %v2462
  %v2464 = vrot.slane %v2250, %v2463
  %v2465 = vcombine.low %v2457, %v2464
  %v2466 = vcombine.low %v2313, %v2322
  %v2468 = vunpack.c.l.s4 1983009808
  %v2469 = vunpack.c.0.s8 %v2468
  %v2470 = vlaneseq
  %v2471 = vshrl.u32 %v2470, 7
  %v2472 = vsub.s32 %v2469, %v2471
  %v2473 = vrot.slane %v2466, %v2472
  %v2475 = vunpack.c.l.s4 1983009808
  %v2476 = vunpack.c.0.s8 %v2475
  %v2477 = vlaneseq
  %v2478 = vshrl.u32 %v2477, 7
  %v2479 = vsub.s32 %v2476, %v2478
  %v2480 = vrot.slane %v2331, %v2479
  %v2481 = vcombine.low %v2473, %v2480
  %2482 = vrot.lane.b32.xlu0 %v2465, 16
  %v2483 = vpop.permute.xlu0 %2482
  %2484 = vrot.lane.b32.xlu0 %v2481, 16
  %v2485 = vpop.permute.xlu0 %2484
  %v2494 = vcombine.low %v2233, %v2242
  %v2496 = vunpack.c.l.s4 1983009808
  %v2497 = vunpack.c.0.s8 %v2496
  %v2498 = vlaneseq
  %v2499 = vshrl.u32 %v2498, 7
  %v2500 = vsub.s32 %v2497, %v2499
  %v2501 = vrot.slane %v2494, %v2500
  %v2503 = vunpack.c.l.s4 1983009808
  %v2504 = vunpack.c.0.s8 %v2503
  %v2505 = vlaneseq
  %v2506 = vshrl.u32 %v2505, 7
  %v2507 = vsub.s32 %v2504, %v2506
  %v2508 = vrot.slane %v2251, %v2507
  %v2509 = vcombine.low %v2501, %v2508
  %v2510 = vcombine.low %v2314, %v2323
  %v2512 = vunpack.c.l.s4 1983009808
  %v2513 = vunpack.c.0.s8 %v2512
  %v2514 = vlaneseq
  %v2515 = vshrl.u32 %v2514, 7
  %v2516 = vsub.s32 %v2513, %v2515
  %v2517 = vrot.slane %v2510, %v2516
  %v2519 = vunpack.c.l.s4 1983009808
  %v2520 = vunpack.c.0.s8 %v2519
  %v2521 = vlaneseq
  %v2522 = vshrl.u32 %v2521, 7
  %v2523 = vsub.s32 %v2520, %v2522
  %v2524 = vrot.slane %v2332, %v2523
  %v2525 = vcombine.low %v2517, %v2524
  %2526 = vrot.lane.b32.xlu0 %v2509, 24
  %v2527 = vpop.permute.xlu0 %2526
  %2528 = vrot.lane.b32.xlu0 %v2525, 24
  %v2529 = vpop.permute.xlu0 %2528
  %v2538 = vcombine.low %v2259, %v2268
  %v2540 = vunpack.c.l.s4 1983009808
  %v2541 = vunpack.c.0.s8 %v2540
  %v2542 = vlaneseq
  %v2543 = vshrl.u32 %v2542, 7
  %v2544 = vsub.s32 %v2541, %v2543
  %v2545 = vrot.slane %v2538, %v2544
  %v2547 = vunpack.c.l.s4 1983009808
  %v2548 = vunpack.c.0.s8 %v2547
  %v2549 = vlaneseq
  %v2550 = vshrl.u32 %v2549, 7
  %v2551 = vsub.s32 %v2548, %v2550
  %v2552 = vrot.slane %v2277, %v2551
  %v2553 = vcombine.low %v2545, %v2552
  %v2554 = vcombine.low %v2340, %v2349
  %v2556 = vunpack.c.l.s4 1983009808
  %v2557 = vunpack.c.0.s8 %v2556
  %v2558 = vlaneseq
  %v2559 = vshrl.u32 %v2558, 7
  %v2560 = vsub.s32 %v2557, %v2559
  %v2561 = vrot.slane %v2554, %v2560
  %v2563 = vunpack.c.l.s4 1983009808
  %v2564 = vunpack.c.0.s8 %v2563
  %v2565 = vlaneseq
  %v2566 = vshrl.u32 %v2565, 7
  %v2567 = vsub.s32 %v2564, %v2566
  %v2568 = vrot.slane %v2358, %v2567
  %v2569 = vcombine.low %v2561, %v2568
  %2570 = vrot.lane.b32.xlu0 %v2553, 32
  %v2571 = vpop.permute.xlu0 %2570
  %2572 = vrot.lane.b32.xlu0 %v2569, 32
  %v2573 = vpop.permute.xlu0 %2572
  %v2582 = vcombine.low %v2260, %v2269
  %v2584 = vunpack.c.l.s4 1983009808
  %v2585 = vunpack.c.0.s8 %v2584
  %v2586 = vlaneseq
  %v2587 = vshrl.u32 %v2586, 7
  %v2588 = vsub.s32 %v2585, %v2587
  %v2589 = vrot.slane %v2582, %v2588
  %v2591 = vunpack.c.l.s4 1983009808
  %v2592 = vunpack.c.0.s8 %v2591
  %v2593 = vlaneseq
  %v2594 = vshrl.u32 %v2593, 7
  %v2595 = vsub.s32 %v2592, %v2594
  %v2596 = vrot.slane %v2278, %v2595
  %v2597 = vcombine.low %v2589, %v2596
  %v2598 = vcombine.low %v2341, %v2350
  %v2600 = vunpack.c.l.s4 1983009808
  %v2601 = vunpack.c.0.s8 %v2600
  %v2602 = vlaneseq
  %v2603 = vshrl.u32 %v2602, 7
  %v2604 = vsub.s32 %v2601, %v2603
  %v2605 = vrot.slane %v2598, %v2604
  %v2607 = vunpack.c.l.s4 1983009808
  %v2608 = vunpack.c.0.s8 %v2607
  %v2609 = vlaneseq
  %v2610 = vshrl.u32 %v2609, 7
  %v2611 = vsub.s32 %v2608, %v2610
  %v2612 = vrot.slane %v2359, %v2611
  %v2613 = vcombine.low %v2605, %v2612
  %2614 = vrot.lane.b32.xlu0 %v2597, 40
  %v2615 = vpop.permute.xlu0 %2614
  %2616 = vrot.lane.b32.xlu0 %v2613, 40
  %v2617 = vpop.permute.xlu0 %2616
  %vm2620 = vcmask 64512
  %v2621 = vsel %vm2620, %v2381, %v2439
  %v2622 = vsel %vm2620, %v2397, %v2441
  %vm2623 = vcmask 130048
  %v2624 = vsel %vm2623, %v2621, %v2483
  %v2625 = vsel %vm2623, %v2622, %v2485
  %vm2626 = vcmask 195584
  %v2627 = vsel %vm2626, %v2624, %v2527
  %v2628 = vsel %vm2626, %v2625, %v2529
  %vm2629 = vcmask 261120
  %v2630 = vsel %vm2629, %v2627, %v2571
  %v2631 = vsel %vm2629, %v2628, %v2573
  %vm2632 = vcmask 326656
  %v2633 = vsel %vm2632, %v2630, %v2615
  %v2634 = vsel %vm2632, %v2631, %v2617
  %vm2635 = vcmask 390144
  %2636 = vst.msk [vmem:[%s8] sm:$0x3f] %vm2635, %v2633
  %2637 = vst.msk [vmem:[%s8 + $0x8] sm:$0x3f] %vm2635, %v2634
  // Predicated region
  $region30: #{tpu_custom_call.1} parent=0 // pred_check
    _
  $region31: #{tpu_custom_call.1} parent=0 // pred_check_branch
    %2639 = sbr.rel (0) target = $region33
  $region32: #{tpu_custom_call.1} parent=0 // pred_region
    _
  $region33: #{tpu_custom_call.1} parent=0 // pred_fallthru
    _
  // Predicated region
  $region34: #{tpu_custom_call.1} parent=0 // pred_check
    _
  $region35: #{tpu_custom_call.1} parent=0 // pred_check_branch
    %2641 = sbr.rel (0) target = $region37
  $region36: #{tpu_custom_call.1} parent=0 // pred_region
    _
  $region37: #{tpu_custom_call.1} parent=0 // pred_fallthru
    _
  // Predicated region
  $region38: #{tpu_custom_call.1} parent=0 // pred_check
    _
  $region39: #{tpu_custom_call.1} parent=0 // pred_check_branch
    %2643 = sbr.rel (0) target = $region41
  $region40: #{tpu_custom_call.1} parent=0 // pred_region
    _
  $region41: #{tpu_custom_call.1} parent=0 // pred_fallthru
    _
  // Predicated region
  $region42: #{tpu_custom_call.1} parent=0 // pred_check
    _
  $region43: #{tpu_custom_call.1} parent=0 // pred_check_branch
    %2645 = sbr.rel (0) target = $region45
  $region44: #{tpu_custom_call.1} parent=0 // pred_region
    _
  $region45: #{tpu_custom_call.1} parent=0 // pred_fallthru
    _

</llo_original>
